<compile_context>
chip_gen: v6e
topology: v6e:2x2x1
jax: 0.10.0
libtpu: 0.0.40
codegen_flags: <defaults>
</compile_context>

<pallas_src>
import jax
import jax.numpy as jnp
from jax import lax
from jax.experimental import pallas as pl
from jax.experimental.pallas import tpu as pltpu

# ----------------------------------------------------------------------------
# Config (small, consistent with the module's forward)
# ----------------------------------------------------------------------------
VOCAB_SIZE = 12          # stand-in for len(SEQ_TO_TOKEN)
INPUT_DIM = 32           # embedding dim
HIDDEN_DIM = 32          # LSTM hidden dim
NUM_LSTM_LAYERS = 2
BATCH = 4
SEQ_LEN = 8


# ----------------------------------------------------------------------------
# Pallas kernel: fused embedding + layer-0 projection + L-layer LSTM recurrence
# ----------------------------------------------------------------------------
def make_lstm_kernel(T, BP, VP, H, L):
    def lstm_cell(gates, c_prev):
        # One EUP pass per activation: sigmoid(x) == 0.5 * tanh(0.5*x) + 0.5
        sig = 0.5 * jnp.tanh(0.5 * gates) + 0.5
        tnh = jnp.tanh(gates)
        i_g = sig[:, 0 * H:1 * H]          # PyTorch gate order: i, f, g, o
        f_g = sig[:, 1 * H:2 * H]
        g_g = tnh[:, 2 * H:3 * H]
        o_g = sig[:, 3 * H:4 * H]
        c_new = f_g * c_prev + i_g * g_g
        h_new = o_g * jnp.tanh(c_new)
        return h_new, c_new

    def kernel(tok_ref, lens_ref, h0_ref, tab0_ref, b0_ref, *rest):
        out_ref = rest[-1]                 # (BP, T*H) f32, batch-first
        wrefs = rest[:-1]                  # [whh_0, (wih_l, whh_l, b_l) for l>=1]

        # ---- hoist all weight/bias loads out of the time loop --------------
        whh = [wrefs[0][...]]              # (H, 4H) bf16
        wih = [None]                       # layer-0 x-proj is pre-batched below
        bias = [b0_ref[...]]               # (1, 4H) f32
        for l in range(1, L):
            wih.append(wrefs[3 * l - 2][...])
            whh.append(wrefs[3 * l - 1][...])
            bias.append(wrefs[3 * l][...])

        tok = tok_ref[...]                 # (T*BP, 1) i32, time-major rows
        lens = lens_ref[...]               # (BP, 1) i32

        # ---- fused embedding gather + layer-0 input projection --------------
        # one_hot(tok) @ (emb @ W_ih0^T): ONE batched MXU matmul over all T
        # timesteps, off the recurrence critical path.
        onehot = (lax.broadcasted_iota(jnp.int32, (T * BP, VP), 1) == tok
                  ).astype(jnp.bfloat16)                              # (T*BP, VP)
        x_proj0 = jnp.dot(onehot, tab0_ref[...],
                          preferred_element_type=jnp.float32) + bias[0]  # (T*BP,4H)

        # ---- recurrence: h/c live in vregs, time loop fully unrolled --------
        # Module calls self.lstm(x, (h, h)) -> c0 == h0 (zeros when h is None).
        hs = [h0_ref[l] for l in range(L)]
        cs = [h0_ref[l] for l in range(L)]

        for t in range(T):
            # layer 0: only the serial h @ W_hh half stays on the chain (K=H)
            g = x_proj0[t * BP:(t + 1) * BP, :] + jnp.dot(
                hs[0].astype(jnp.bfloat16), whh[0],
                preferred_element_type=jnp.float32)
            hs[0], cs[0] = lstm_cell(g, cs[0])
            inp = hs[0]

            for l in range(1, L):
                g = (jnp.dot(inp.astype(jnp.bfloat16), wih[l],
                             preferred_element_type=jnp.float32)
                     + jnp.dot(hs[l].astype(jnp.bfloat16), whh[l],
                               preferred_element_type=jnp.float32)
                     + bias[l])
                hs[l], cs[l] = lstm_cell(g, cs[l])
                inp = hs[l]

            # pad_packed_sequence semantics: zero outputs past each length.
            m_t = (t < lens).astype(jnp.float32)          # (BP, 1)
            # batch-first store: static lane slice [t*H, (t+1)*H)
            out_ref[:, t * H:(t + 1) * H] = inp * m_t

    return kernel


# ----------------------------------------------------------------------------
# One-time parameter preparation (init-time padding / transposes / bf16 cast)
# ----------------------------------------------------------------------------
def prepare_kernel_params(params):
    """Fold emb @ W_ih0^T into one gather table, transpose weights for
    (B, Din) @ (Din, 4H) dots, fuse biases, cast MXU operands to bf16."""
    emb = params["embedding"]                  # (V, D) f32
    layers = params["layers"]                  # [(W_ih, W_hh, b_ih, b_hh), ...]
    V, D = emb.shape
    L = len(layers)
    VP = -(-V // 8) * 8                        # pad vocab rows to sublane width

    emb_p = jnp.zeros((VP, D), jnp.float32).at[:V].set(emb.astype(jnp.float32))
    w_ih0, w_hh0, b_ih0, b_hh0 = layers[0]
    tab0 = jnp.dot(emb_p, w_ih0.T.astype(jnp.float32)).astype(jnp.bfloat16)  # (VP,4H)
    flat = [tab0,
            (b_ih0 + b_hh0).reshape(1, -1).astype(jnp.float32),
            w_hh0.T.astype(jnp.bfloat16)]
    for l in range(1, L):
        w_ih, w_hh, b_ih, b_hh = layers[l]
        flat += [w_ih.T.astype(jnp.bfloat16),
                 w_hh.T.astype(jnp.bfloat16),
                 (b_ih + b_hh).reshape(1, -1).astype(jnp.float32)]
    return tuple(flat)


# ----------------------------------------------------------------------------
# Per-call wrapper (equivalent of SequenceEmbedding.forward(x, x_len, h))
# ----------------------------------------------------------------------------
def sequence_embedding_forward(x_tokens, x_len, h0, kparams):
    """x_tokens: (B, T) int32; x_len: (B,) int32 (max == T); h0: (L, B, H) or None.
    Returns (out, x_len) with out: (B, T, H) f32, zeros past each length."""
    tab0 = kparams[0]
    VP, fourH = tab0.shape
    H = fourH // 4
    L = (len(kparams) - 3) // 3 + 1
    B, T = x_tokens.shape
    BP = max(8, -(-B // 8) * 8)                # pad batch to sublane width

    if h0 is None:
        h0 = jnp.zeros((L, B, H), jnp.float32)

    # per-call glue kept minimal (one fused pad/layout expression each)
    tok_tm = jnp.pad(x_tokens.astype(jnp.int32),
                     ((0, BP - B), (0, 0))).T.reshape(T * BP, 1)   # time-major
    lens_p = jnp.pad(x_len.astype(jnp.int32), (0, BP - B)).reshape(BP, 1)
    h0_p = jnp.pad(h0.astype(jnp.float32), ((0, 0), (0, BP - B), (0, 0)))

    vmem = pl.BlockSpec(memory_space=pltpu.MemorySpace.VMEM)
    out2d = pl.pallas_call(
        make_lstm_kernel(T, BP, VP, H, L),
        out_shape=jax.ShapeDtypeStruct((BP, T * H), jnp.float32),
        in_specs=[vmem] * (3 + len(kparams)),
        out_specs=vmem,
    )(tok_tm, lens_p, h0_p, *kparams)

    # row-major (BP, T*H) -> (BP, T, H) is a free view; no transpose needed.
    out = out2d.reshape(BP, T, H)[:B]
    return out, x_len


# ----------------------------------------------------------------------------
# Pure-JAX f32 reference (for correctness check of the kernel)
# ----------------------------------------------------------------------------
def reference_forward(x_tokens, x_len, h0, params):
    emb = params["embedding"]
    layers = params["layers"]
    B, T = x_tokens.shape
    L = len(layers)
    H = layers[0][1].shape[1]
    if h0 is None:
        h0 = jnp.zeros((L, B, H), jnp.float32)
    inp_seq = emb[x_tokens]                              # (B, T, D)
    for l, (w_ih, w_hh, b_ih, b_hh) in enumerate(layers):
        h_l = h0[l]
        c_l = h0[l]                                      # module passes (h, h)
        outs = []
        for t in range(T):
            gates = inp_seq[:, t] @ w_ih.T + h_l @ w_hh.T + b_ih + b_hh
            i_g = jax.nn.sigmoid(gates[:, 0 * H:1 * H])
            f_g = jax.nn.sigmoid(gates[:, 1 * H:2 * H])
            g_g = jnp.tanh(gates[:, 2 * H:3 * H])
            o_g = jax.nn.sigmoid(gates[:, 3 * H:4 * H])
            c_l = f_g * c_l + i_g * g_g
            h_l = o_g * jnp.tanh(c_l)
            outs.append(h_l)
        inp_seq = jnp.stack(outs, axis=1)                # (B, T, H)
    mask = (jnp.arange(T)[None, :] < x_len[:, None]).astype(jnp.float32)
    return inp_seq * mask[:, :, None], x_len


# ----------------------------------------------------------------------------
# Deterministic parameter init (PyTorch nn.Embedding / nn.LSTM shapes)
# ----------------------------------------------------------------------------
def init_params(key, vocab, input_dim, hidden_dim, num_layers):
    keys = jax.random.split(key, 1 + 4 * num_layers)
    emb = jax.random.normal(keys[0], (vocab, input_dim), jnp.float32)
    bound = hidden_dim ** -0.5
    layers = []
    for l in range(num_layers):
        din = input_dim if l == 0 else hidden_dim
        k = keys[1 + 4 * l: 1 + 4 * (l + 1)]
        w_ih = jax.random.uniform(k[0], (4 * hidden_dim, din), jnp.float32, -bound, bound)
        w_hh = jax.random.uniform(k[1], (4 * hidden_dim, hidden_dim), jnp.float32, -bound, bound)
        b_ih = jax.random.uniform(k[2], (4 * hidden_dim,), jnp.float32, -bound, bound)
        b_hh = jax.random.uniform(k[3], (4 * hidden_dim,), jnp.float32, -bound, bound)
        layers.append((w_ih, w_hh, b_ih, b_hh))
    return {"embedding": emb, "layers": layers}


if __name__ == "__main__":
    key = jax.random.PRNGKey(0)
    k_param, k_tok, k_h = jax.random.split(key, 3)

    params = init_params(k_param, VOCAB_SIZE, INPUT_DIM, HIDDEN_DIM, NUM_LSTM_LAYERS)
    kparams = prepare_kernel_params(params)        # init-time: pad + transpose + bf16

    x_tokens = jax.random.randint(k_tok, (BATCH, SEQ_LEN), 0, VOCAB_SIZE, jnp.int32)
    x_len = jnp.array([SEQ_LEN, 5, 7, 3], jnp.int32)   # max == SEQ_LEN
    h0 = jax.random.normal(k_h, (NUM_LSTM_LAYERS, BATCH, HIDDEN_DIM), jnp.float32)

    fwd = jax.jit(sequence_embedding_forward)
    out, out_len = fwd(x_tokens, x_len, h0, kparams)
    out = jax.block_until_ready(out)

    ref_out, _ = reference_forward(x_tokens, x_len, h0, params)
    assert out.shape == (BATCH, SEQ_LEN, HIDDEN_DIM)
    # bf16 MXU operands -> relaxed tolerance vs. the f32 reference
    assert jnp.allclose(out, ref_out, atol=3e-2, rtol=3e-2), \
        float(jnp.max(jnp.abs(out - ref_out)))

    print("KERNEL_OK")
</pallas_src>

<mosaic_0001>
module attributes {stable_mosaic.version = 11 : i64} {
  func.func @kernel(%arg0: memref<64x1xi32, #tpu.memory_space<vmem>>, %arg1: memref<8x1xi32, #tpu.memory_space<vmem>>, %arg2: memref<2x8x32xf32, #tpu.memory_space<vmem>>, %arg3: memref<16x128xbf16, #tpu.memory_space<vmem>>, %arg4: memref<1x128xf32, #tpu.memory_space<vmem>>, %arg5: memref<32x128xbf16, #tpu.memory_space<vmem>>, %arg6: memref<32x128xbf16, #tpu.memory_space<vmem>>, %arg7: memref<32x128xbf16, #tpu.memory_space<vmem>>, %arg8: memref<1x128xf32, #tpu.memory_space<vmem>>, %arg9: memref<8x256xf32, #tpu.memory_space<vmem>>) attributes {dimension_semantics = [], scalar_prefetch = 0 : i64, scratch_operands = 0 : i64, tpu.core_type = #tpu.core_type<tc>} {
    %c0 = arith.constant 0 : index
    %c0_0 = arith.constant 0 : index
    %0 = vector.load %arg5[%c0, %c0_0] : memref<32x128xbf16, #tpu.memory_space<vmem>>, vector<32x128xbf16>
    %c0_1 = arith.constant 0 : index
    %c0_2 = arith.constant 0 : index
    %1 = vector.load %arg4[%c0_1, %c0_2] : memref<1x128xf32, #tpu.memory_space<vmem>>, vector<1x128xf32>
    %c0_3 = arith.constant 0 : index
    %c0_4 = arith.constant 0 : index
    %2 = vector.load %arg6[%c0_3, %c0_4] : memref<32x128xbf16, #tpu.memory_space<vmem>>, vector<32x128xbf16>
    %c0_5 = arith.constant 0 : index
    %c0_6 = arith.constant 0 : index
    %3 = vector.load %arg7[%c0_5, %c0_6] : memref<32x128xbf16, #tpu.memory_space<vmem>>, vector<32x128xbf16>
    %c0_7 = arith.constant 0 : index
    %c0_8 = arith.constant 0 : index
    %4 = vector.load %arg8[%c0_7, %c0_8] : memref<1x128xf32, #tpu.memory_space<vmem>>, vector<1x128xf32>
    %c0_9 = arith.constant 0 : index
    %c0_10 = arith.constant 0 : index
    %5 = vector.load %arg0[%c0_9, %c0_10] : memref<64x1xi32, #tpu.memory_space<vmem>>, vector<64x1xi32>
    %c0_11 = arith.constant 0 : index
    %c0_12 = arith.constant 0 : index
    %6 = vector.load %arg1[%c0_11, %c0_12] : memref<8x1xi32, #tpu.memory_space<vmem>>, vector<8x1xi32>
    %7 = tpu.iota {dimensions = array<i32: 1>} : vector<64x16xi32>
    %8 = vector.broadcast %5 : vector<64x1xi32> to vector<64x16xi32>
    %9 = arith.cmpi eq, %7, %8 : vector<64x16xi32>
    %10 = arith.extui %9 : vector<64x16xi1> to vector<64x16xi32>
    %11 = arith.sitofp %10 : vector<64x16xi32> to vector<64x16xf32>
    %12 = arith.truncf %11 : vector<64x16xf32> to vector<64x16xbf16>
    %c0_13 = arith.constant 0 : index
    %c0_14 = arith.constant 0 : index
    %13 = vector.load %arg3[%c0_13, %c0_14] : memref<16x128xbf16, #tpu.memory_space<vmem>>, vector<16x128xbf16>
    %cst = arith.constant dense<0.000000e+00> : vector<64x128xf32>
    %14 = tpu.matmul %12, %13, %cst {dimension_numbers = #tpu.dot_dimension_numbers<[1], [0], [0], [1], [0, 0, 1, 1], [], []>} : vector<64x16xbf16>, vector<16x128xbf16>, vector<64x128xf32> -> vector<64x128xf32>
    %15 = vector.broadcast %1 : vector<1x128xf32> to vector<64x128xf32>
    %16 = arith.addf %14, %15 : vector<64x128xf32>
    %c0_15 = arith.constant 0 : index
    %c0_16 = arith.constant 0 : index
    %c0_17 = arith.constant 0 : index
    %17 = vector.load %arg2[%c0_15, %c0_16, %c0_17] : memref<2x8x32xf32, #tpu.memory_space<vmem>>, vector<1x8x32xf32>
    %18 = vector.shape_cast %17 : vector<1x8x32xf32> to vector<8x32xf32>
    %c1 = arith.constant 1 : index
    %c0_18 = arith.constant 0 : index
    %c0_19 = arith.constant 0 : index
    %19 = vector.load %arg2[%c1, %c0_18, %c0_19] : memref<2x8x32xf32, #tpu.memory_space<vmem>>, vector<1x8x32xf32>
    %20 = vector.shape_cast %19 : vector<1x8x32xf32> to vector<8x32xf32>
    %c0_20 = arith.constant 0 : index
    %c0_21 = arith.constant 0 : index
    %c0_22 = arith.constant 0 : index
    %21 = vector.load %arg2[%c0_20, %c0_21, %c0_22] : memref<2x8x32xf32, #tpu.memory_space<vmem>>, vector<1x8x32xf32>
    %22 = vector.shape_cast %21 : vector<1x8x32xf32> to vector<8x32xf32>
    %c1_23 = arith.constant 1 : index
    %c0_24 = arith.constant 0 : index
    %c0_25 = arith.constant 0 : index
    %23 = vector.load %arg2[%c1_23, %c0_24, %c0_25] : memref<2x8x32xf32, #tpu.memory_space<vmem>>, vector<1x8x32xf32>
    %24 = vector.shape_cast %23 : vector<1x8x32xf32> to vector<8x32xf32>
    %25 = vector.extract_strided_slice %16 {offsets = [0, 0], sizes = [8, 128], strides = [1, 1]} : vector<64x128xf32> to vector<8x128xf32>
    %26 = arith.truncf %18 : vector<8x32xf32> to vector<8x32xbf16>
    %cst_26 = arith.constant dense<0.000000e+00> : vector<8x128xf32>
    %27 = tpu.matmul %26, %0, %cst_26 {dimension_numbers = #tpu.dot_dimension_numbers<[1], [0], [0], [1], [0, 0, 1, 1], [], []>} : vector<8x32xbf16>, vector<32x128xbf16>, vector<8x128xf32> -> vector<8x128xf32>
    %28 = arith.addf %25, %27 : vector<8x128xf32>
    %cst_27 = arith.constant 5.000000e-01 : f32
    %29 = vector.broadcast %cst_27 : f32 to vector<8x128xf32>
    %30 = arith.mulf %29, %28 : vector<8x128xf32>
    %31 = math.tanh %30 : vector<8x128xf32>
    %cst_28 = arith.constant 5.000000e-01 : f32
    %32 = vector.broadcast %cst_28 : f32 to vector<8x128xf32>
    %33 = arith.mulf %32, %31 : vector<8x128xf32>
    %cst_29 = arith.constant 5.000000e-01 : f32
    %34 = vector.broadcast %cst_29 : f32 to vector<8x128xf32>
    %35 = arith.addf %33, %34 : vector<8x128xf32>
    %36 = math.tanh %28 : vector<8x128xf32>
    %37 = vector.extract_strided_slice %35 {offsets = [0, 0], sizes = [8, 32], strides = [1, 1]} : vector<8x128xf32> to vector<8x32xf32>
    %38 = vector.extract_strided_slice %35 {offsets = [0, 32], sizes = [8, 32], strides = [1, 1]} : vector<8x128xf32> to vector<8x32xf32>
    %39 = vector.extract_strided_slice %36 {offsets = [0, 64], sizes = [8, 32], strides = [1, 1]} : vector<8x128xf32> to vector<8x32xf32>
    %40 = vector.extract_strided_slice %35 {offsets = [0, 96], sizes = [8, 32], strides = [1, 1]} : vector<8x128xf32> to vector<8x32xf32>
    %41 = arith.mulf %38, %22 : vector<8x32xf32>
    %42 = arith.mulf %37, %39 : vector<8x32xf32>
    %43 = arith.addf %41, %42 : vector<8x32xf32>
    %44 = math.tanh %43 : vector<8x32xf32>
    %45 = arith.mulf %40, %44 : vector<8x32xf32>
    %46 = arith.truncf %45 : vector<8x32xf32> to vector<8x32xbf16>
    %cst_30 = arith.constant dense<0.000000e+00> : vector<8x128xf32>
    %47 = tpu.matmul %46, %2, %cst_30 {dimension_numbers = #tpu.dot_dimension_numbers<[1], [0], [0], [1], [0, 0, 1, 1], [], []>} : vector<8x32xbf16>, vector<32x128xbf16>, vector<8x128xf32> -> vector<8x128xf32>
    %48 = arith.truncf %20 : vector<8x32xf32> to vector<8x32xbf16>
    %cst_31 = arith.constant dense<0.000000e+00> : vector<8x128xf32>
    %49 = tpu.matmul %48, %3, %cst_31 {dimension_numbers = #tpu.dot_dimension_numbers<[1], [0], [0], [1], [0, 0, 1, 1], [], []>} : vector<8x32xbf16>, vector<32x128xbf16>, vector<8x128xf32> -> vector<8x128xf32>
    %50 = arith.addf %47, %49 : vector<8x128xf32>
    %51 = vector.broadcast %4 : vector<1x128xf32> to vector<8x128xf32>
    %52 = arith.addf %50, %51 : vector<8x128xf32>
    %cst_32 = arith.constant 5.000000e-01 : f32
    %53 = vector.broadcast %cst_32 : f32 to vector<8x128xf32>
    %54 = arith.mulf %53, %52 : vector<8x128xf32>
    %55 = math.tanh %54 : vector<8x128xf32>
    %cst_33 = arith.constant 5.000000e-01 : f32
    %56 = vector.broadcast %cst_33 : f32 to vector<8x128xf32>
    %57 = arith.mulf %56, %55 : vector<8x128xf32>
    %cst_34 = arith.constant 5.000000e-01 : f32
    %58 = vector.broadcast %cst_34 : f32 to vector<8x128xf32>
    %59 = arith.addf %57, %58 : vector<8x128xf32>
    %60 = math.tanh %52 : vector<8x128xf32>
    %61 = vector.extract_strided_slice %59 {offsets = [0, 0], sizes = [8, 32], strides = [1, 1]} : vector<8x128xf32> to vector<8x32xf32>
    %62 = vector.extract_strided_slice %59 {offsets = [0, 32], sizes = [8, 32], strides = [1, 1]} : vector<8x128xf32> to vector<8x32xf32>
    %63 = vector.extract_strided_slice %60 {offsets = [0, 64], sizes = [8, 32], strides = [1, 1]} : vector<8x128xf32> to vector<8x32xf32>
    %64 = vector.extract_strided_slice %59 {offsets = [0, 96], sizes = [8, 32], strides = [1, 1]} : vector<8x128xf32> to vector<8x32xf32>
    %65 = arith.mulf %62, %24 : vector<8x32xf32>
    %66 = arith.mulf %61, %63 : vector<8x32xf32>
    %67 = arith.addf %65, %66 : vector<8x32xf32>
    %68 = math.tanh %67 : vector<8x32xf32>
    %69 = arith.mulf %64, %68 : vector<8x32xf32>
    %c0_i32 = arith.constant 0 : i32
    %70 = vector.broadcast %c0_i32 : i32 to vector<8x1xi32>
    %71 = arith.cmpi sgt, %6, %70 : vector<8x1xi32>
    %72 = arith.extui %71 : vector<8x1xi1> to vector<8x1xi32>
    %73 = arith.sitofp %72 : vector<8x1xi32> to vector<8x1xf32>
    %74 = vector.broadcast %73 : vector<8x1xf32> to vector<8x32xf32>
    %75 = arith.mulf %69, %74 : vector<8x32xf32>
    %c0_35 = arith.constant 0 : index
    %c0_36 = arith.constant 0 : index
    %76 = vector.load %arg9[%c0_35, %c0_36] : memref<8x256xf32, #tpu.memory_space<vmem>>, vector<8x32xf32>
    tpu.vector_store %arg9[%c0_35, %c0_36], %75 {strides = array<i32>} : memref<8x256xf32, #tpu.memory_space<vmem>>, vector<8x32xf32>,
    %77 = vector.extract_strided_slice %16 {offsets = [8, 0], sizes = [8, 128], strides = [1, 1]} : vector<64x128xf32> to vector<8x128xf32>
    %78 = arith.truncf %45 : vector<8x32xf32> to vector<8x32xbf16>
    %cst_37 = arith.constant dense<0.000000e+00> : vector<8x128xf32>
    %79 = tpu.matmul %78, %0, %cst_37 {dimension_numbers = #tpu.dot_dimension_numbers<[1], [0], [0], [1], [0, 0, 1, 1], [], []>} : vector<8x32xbf16>, vector<32x128xbf16>, vector<8x128xf32> -> vector<8x128xf32>
    %80 = arith.addf %77, %79 : vector<8x128xf32>
    %cst_38 = arith.constant 5.000000e-01 : f32
    %81 = vector.broadcast %cst_38 : f32 to vector<8x128xf32>
    %82 = arith.mulf %81, %80 : vector<8x128xf32>
    %83 = math.tanh %82 : vector<8x128xf32>
    %cst_39 = arith.constant 5.000000e-01 : f32
    %84 = vector.broadcast %cst_39 : f32 to vector<8x128xf32>
    %85 = arith.mulf %84, %83 : vector<8x128xf32>
    %cst_40 = arith.constant 5.000000e-01 : f32
    %86 = vector.broadcast %cst_40 : f32 to vector<8x128xf32>
    %87 = arith.addf %85, %86 : vector<8x128xf32>
    %88 = math.tanh %80 : vector<8x128xf32>
    %89 = vector.extract_strided_slice %87 {offsets = [0, 0], sizes = [8, 32], strides = [1, 1]} : vector<8x128xf32> to vector<8x32xf32>
    %90 = vector.extract_strided_slice %87 {offsets = [0, 32], sizes = [8, 32], strides = [1, 1]} : vector<8x128xf32> to vector<8x32xf32>
    %91 = vector.extract_strided_slice %88 {offsets = [0, 64], sizes = [8, 32], strides = [1, 1]} : vector<8x128xf32> to vector<8x32xf32>
    %92 = vector.extract_strided_slice %87 {offsets = [0, 96], sizes = [8, 32], strides = [1, 1]} : vector<8x128xf32> to vector<8x32xf32>
    %93 = arith.mulf %90, %43 : vector<8x32xf32>
    %94 = arith.mulf %89, %91 : vector<8x32xf32>
    %95 = arith.addf %93, %94 : vector<8x32xf32>
    %96 = math.tanh %95 : vector<8x32xf32>
    %97 = arith.mulf %92, %96 : vector<8x32xf32>
    %98 = arith.truncf %97 : vector<8x32xf32> to vector<8x32xbf16>
    %cst_41 = arith.constant dense<0.000000e+00> : vector<8x128xf32>
    %99 = tpu.matmul %98, %2, %cst_41 {dimension_numbers = #tpu.dot_dimension_numbers<[1], [0], [0], [1], [0, 0, 1, 1], [], []>} : vector<8x32xbf16>, vector<32x128xbf16>, vector<8x128xf32> -> vector<8x128xf32>
    %100 = arith.truncf %69 : vector<8x32xf32> to vector<8x32xbf16>
    %cst_42 = arith.constant dense<0.000000e+00> : vector<8x128xf32>
    %101 = tpu.matmul %100, %3, %cst_42 {dimension_numbers = #tpu.dot_dimension_numbers<[1], [0], [0], [1], [0, 0, 1, 1], [], []>} : vector<8x32xbf16>, vector<32x128xbf16>, vector<8x128xf32> -> vector<8x128xf32>
    %102 = arith.addf %99, %101 : vector<8x128xf32>
    %103 = vector.broadcast %4 : vector<1x128xf32> to vector<8x128xf32>
    %104 = arith.addf %102, %103 : vector<8x128xf32>
    %cst_43 = arith.constant 5.000000e-01 : f32
    %105 = vector.broadcast %cst_43 : f32 to vector<8x128xf32>
    %106 = arith.mulf %105, %104 : vector<8x128xf32>
    %107 = math.tanh %106 : vector<8x128xf32>
    %cst_44 = arith.constant 5.000000e-01 : f32
    %108 = vector.broadcast %cst_44 : f32 to vector<8x128xf32>
    %109 = arith.mulf %108, %107 : vector<8x128xf32>
    %cst_45 = arith.constant 5.000000e-01 : f32
    %110 = vector.broadcast %cst_45 : f32 to vector<8x128xf32>
    %111 = arith.addf %109, %110 : vector<8x128xf32>
    %112 = math.tanh %104 : vector<8x128xf32>
    %113 = vector.extract_strided_slice %111 {offsets = [0, 0], sizes = [8, 32], strides = [1, 1]} : vector<8x128xf32> to vector<8x32xf32>
    %114 = vector.extract_strided_slice %111 {offsets = [0, 32], sizes = [8, 32], strides = [1, 1]} : vector<8x128xf32> to vector<8x32xf32>
    %115 = vector.extract_strided_slice %112 {offsets = [0, 64], sizes = [8, 32], strides = [1, 1]} : vector<8x128xf32> to vector<8x32xf32>
    %116 = vector.extract_strided_slice %111 {offsets = [0, 96], sizes = [8, 32], strides = [1, 1]} : vector<8x128xf32> to vector<8x32xf32>
    %117 = arith.mulf %114, %67 : vector<8x32xf32>
    %118 = arith.mulf %113, %115 : vector<8x32xf32>
    %119 = arith.addf %117, %118 : vector<8x32xf32>
    %120 = math.tanh %119 : vector<8x32xf32>
    %121 = arith.mulf %116, %120 : vector<8x32xf32>
    %c1_i32 = arith.constant 1 : i32
    %122 = vector.broadcast %c1_i32 : i32 to vector<8x1xi32>
    %123 = arith.cmpi sgt, %6, %122 : vector<8x1xi32>
    %124 = arith.extui %123 : vector<8x1xi1> to vector<8x1xi32>
    %125 = arith.sitofp %124 : vector<8x1xi32> to vector<8x1xf32>
    %126 = vector.broadcast %125 : vector<8x1xf32> to vector<8x32xf32>
    %127 = arith.mulf %121, %126 : vector<8x32xf32>
    %c0_46 = arith.constant 0 : index
    %c32 = arith.constant 32 : index
    %128 = vector.load %arg9[%c0_46, %c32] : memref<8x256xf32, #tpu.memory_space<vmem>>, vector<8x32xf32>
    tpu.vector_store %arg9[%c0_46, %c32], %127 {strides = array<i32>} : memref<8x256xf32, #tpu.memory_space<vmem>>, vector<8x32xf32>,
    %129 = vector.extract_strided_slice %16 {offsets = [16, 0], sizes = [8, 128], strides = [1, 1]} : vector<64x128xf32> to vector<8x128xf32>
    %130 = arith.truncf %97 : vector<8x32xf32> to vector<8x32xbf16>
    %cst_47 = arith.constant dense<0.000000e+00> : vector<8x128xf32>
    %131 = tpu.matmul %130, %0, %cst_47 {dimension_numbers = #tpu.dot_dimension_numbers<[1], [0], [0], [1], [0, 0, 1, 1], [], []>} : vector<8x32xbf16>, vector<32x128xbf16>, vector<8x128xf32> -> vector<8x128xf32>
    %132 = arith.addf %129, %131 : vector<8x128xf32>
    %cst_48 = arith.constant 5.000000e-01 : f32
    %133 = vector.broadcast %cst_48 : f32 to vector<8x128xf32>
    %134 = arith.mulf %133, %132 : vector<8x128xf32>
    %135 = math.tanh %134 : vector<8x128xf32>
    %cst_49 = arith.constant 5.000000e-01 : f32
    %136 = vector.broadcast %cst_49 : f32 to vector<8x128xf32>
    %137 = arith.mulf %136, %135 : vector<8x128xf32>
    %cst_50 = arith.constant 5.000000e-01 : f32
    %138 = vector.broadcast %cst_50 : f32 to vector<8x128xf32>
    %139 = arith.addf %137, %138 : vector<8x128xf32>
    %140 = math.tanh %132 : vector<8x128xf32>
    %141 = vector.extract_strided_slice %139 {offsets = [0, 0], sizes = [8, 32], strides = [1, 1]} : vector<8x128xf32> to vector<8x32xf32>
    %142 = vector.extract_strided_slice %139 {offsets = [0, 32], sizes = [8, 32], strides = [1, 1]} : vector<8x128xf32> to vector<8x32xf32>
    %143 = vector.extract_strided_slice %140 {offsets = [0, 64], sizes = [8, 32], strides = [1, 1]} : vector<8x128xf32> to vector<8x32xf32>
    %144 = vector.extract_strided_slice %139 {offsets = [0, 96], sizes = [8, 32], strides = [1, 1]} : vector<8x128xf32> to vector<8x32xf32>
    %145 = arith.mulf %142, %95 : vector<8x32xf32>
    %146 = arith.mulf %141, %143 : vector<8x32xf32>
    %147 = arith.addf %145, %146 : vector<8x32xf32>
    %148 = math.tanh %147 : vector<8x32xf32>
    %149 = arith.mulf %144, %148 : vector<8x32xf32>
    %150 = arith.truncf %149 : vector<8x32xf32> to vector<8x32xbf16>
    %cst_51 = arith.constant dense<0.000000e+00> : vector<8x128xf32>
    %151 = tpu.matmul %150, %2, %cst_51 {dimension_numbers = #tpu.dot_dimension_numbers<[1], [0], [0], [1], [0, 0, 1, 1], [], []>} : vector<8x32xbf16>, vector<32x128xbf16>, vector<8x128xf32> -> vector<8x128xf32>
    %152 = arith.truncf %121 : vector<8x32xf32> to vector<8x32xbf16>
    %cst_52 = arith.constant dense<0.000000e+00> : vector<8x128xf32>
    %153 = tpu.matmul %152, %3, %cst_52 {dimension_numbers = #tpu.dot_dimension_numbers<[1], [0], [0], [1], [0, 0, 1, 1], [], []>} : vector<8x32xbf16>, vector<32x128xbf16>, vector<8x128xf32> -> vector<8x128xf32>
    %154 = arith.addf %151, %153 : vector<8x128xf32>
    %155 = vector.broadcast %4 : vector<1x128xf32> to vector<8x128xf32>
    %156 = arith.addf %154, %155 : vector<8x128xf32>
    %cst_53 = arith.constant 5.000000e-01 : f32
    %157 = vector.broadcast %cst_53 : f32 to vector<8x128xf32>
    %158 = arith.mulf %157, %156 : vector<8x128xf32>
    %159 = math.tanh %158 : vector<8x128xf32>
    %cst_54 = arith.constant 5.000000e-01 : f32
    %160 = vector.broadcast %cst_54 : f32 to vector<8x128xf32>
    %161 = arith.mulf %160, %159 : vector<8x128xf32>
    %cst_55 = arith.constant 5.000000e-01 : f32
    %162 = vector.broadcast %cst_55 : f32 to vector<8x128xf32>
    %163 = arith.addf %161, %162 : vector<8x128xf32>
    %164 = math.tanh %156 : vector<8x128xf32>
    %165 = vector.extract_strided_slice %163 {offsets = [0, 0], sizes = [8, 32], strides = [1, 1]} : vector<8x128xf32> to vector<8x32xf32>
    %166 = vector.extract_strided_slice %163 {offsets = [0, 32], sizes = [8, 32], strides = [1, 1]} : vector<8x128xf32> to vector<8x32xf32>
    %167 = vector.extract_strided_slice %164 {offsets = [0, 64], sizes = [8, 32], strides = [1, 1]} : vector<8x128xf32> to vector<8x32xf32>
    %168 = vector.extract_strided_slice %163 {offsets = [0, 96], sizes = [8, 32], strides = [1, 1]} : vector<8x128xf32> to vector<8x32xf32>
    %169 = arith.mulf %166, %119 : vector<8x32xf32>
    %170 = arith.mulf %165, %167 : vector<8x32xf32>
    %171 = arith.addf %169, %170 : vector<8x32xf32>
    %172 = math.tanh %171 : vector<8x32xf32>
    %173 = arith.mulf %168, %172 : vector<8x32xf32>
    %c2_i32 = arith.constant 2 : i32
    %174 = vector.broadcast %c2_i32 : i32 to vector<8x1xi32>
    %175 = arith.cmpi sgt, %6, %174 : vector<8x1xi32>
    %176 = arith.extui %175 : vector<8x1xi1> to vector<8x1xi32>
    %177 = arith.sitofp %176 : vector<8x1xi32> to vector<8x1xf32>
    %178 = vector.broadcast %177 : vector<8x1xf32> to vector<8x32xf32>
    %179 = arith.mulf %173, %178 : vector<8x32xf32>
    %c0_56 = arith.constant 0 : index
    %c64 = arith.constant 64 : index
    %180 = vector.load %arg9[%c0_56, %c64] : memref<8x256xf32, #tpu.memory_space<vmem>>, vector<8x32xf32>
    tpu.vector_store %arg9[%c0_56, %c64], %179 {strides = array<i32>} : memref<8x256xf32, #tpu.memory_space<vmem>>, vector<8x32xf32>,
    %181 = vector.extract_strided_slice %16 {offsets = [24, 0], sizes = [8, 128], strides = [1, 1]} : vector<64x128xf32> to vector<8x128xf32>
    %182 = arith.truncf %149 : vector<8x32xf32> to vector<8x32xbf16>
    %cst_57 = arith.constant dense<0.000000e+00> : vector<8x128xf32>
    %183 = tpu.matmul %182, %0, %cst_57 {dimension_numbers = #tpu.dot_dimension_numbers<[1], [0], [0], [1], [0, 0, 1, 1], [], []>} : vector<8x32xbf16>, vector<32x128xbf16>, vector<8x128xf32> -> vector<8x128xf32>
    %184 = arith.addf %181, %183 : vector<8x128xf32>
    %cst_58 = arith.constant 5.000000e-01 : f32
    %185 = vector.broadcast %cst_58 : f32 to vector<8x128xf32>
    %186 = arith.mulf %185, %184 : vector<8x128xf32>
    %187 = math.tanh %186 : vector<8x128xf32>
    %cst_59 = arith.constant 5.000000e-01 : f32
    %188 = vector.broadcast %cst_59 : f32 to vector<8x128xf32>
    %189 = arith.mulf %188, %187 : vector<8x128xf32>
    %cst_60 = arith.constant 5.000000e-01 : f32
    %190 = vector.broadcast %cst_60 : f32 to vector<8x128xf32>
    %191 = arith.addf %189, %190 : vector<8x128xf32>
    %192 = math.tanh %184 : vector<8x128xf32>
    %193 = vector.extract_strided_slice %191 {offsets = [0, 0], sizes = [8, 32], strides = [1, 1]} : vector<8x128xf32> to vector<8x32xf32>
    %194 = vector.extract_strided_slice %191 {offsets = [0, 32], sizes = [8, 32], strides = [1, 1]} : vector<8x128xf32> to vector<8x32xf32>
    %195 = vector.extract_strided_slice %192 {offsets = [0, 64], sizes = [8, 32], strides = [1, 1]} : vector<8x128xf32> to vector<8x32xf32>
    %196 = vector.extract_strided_slice %191 {offsets = [0, 96], sizes = [8, 32], strides = [1, 1]} : vector<8x128xf32> to vector<8x32xf32>
    %197 = arith.mulf %194, %147 : vector<8x32xf32>
    %198 = arith.mulf %193, %195 : vector<8x32xf32>
    %199 = arith.addf %197, %198 : vector<8x32xf32>
    %200 = math.tanh %199 : vector<8x32xf32>
    %201 = arith.mulf %196, %200 : vector<8x32xf32>
    %202 = arith.truncf %201 : vector<8x32xf32> to vector<8x32xbf16>
    %cst_61 = arith.constant dense<0.000000e+00> : vector<8x128xf32>
    %203 = tpu.matmul %202, %2, %cst_61 {dimension_numbers = #tpu.dot_dimension_numbers<[1], [0], [0], [1], [0, 0, 1, 1], [], []>} : vector<8x32xbf16>, vector<32x128xbf16>, vector<8x128xf32> -> vector<8x128xf32>
    %204 = arith.truncf %173 : vector<8x32xf32> to vector<8x32xbf16>
    %cst_62 = arith.constant dense<0.000000e+00> : vector<8x128xf32>
    %205 = tpu.matmul %204, %3, %cst_62 {dimension_numbers = #tpu.dot_dimension_numbers<[1], [0], [0], [1], [0, 0, 1, 1], [], []>} : vector<8x32xbf16>, vector<32x128xbf16>, vector<8x128xf32> -> vector<8x128xf32>
    %206 = arith.addf %203, %205 : vector<8x128xf32>
    %207 = vector.broadcast %4 : vector<1x128xf32> to vector<8x128xf32>
    %208 = arith.addf %206, %207 : vector<8x128xf32>
    %cst_63 = arith.constant 5.000000e-01 : f32
    %209 = vector.broadcast %cst_63 : f32 to vector<8x128xf32>
    %210 = arith.mulf %209, %208 : vector<8x128xf32>
    %211 = math.tanh %210 : vector<8x128xf32>
    %cst_64 = arith.constant 5.000000e-01 : f32
    %212 = vector.broadcast %cst_64 : f32 to vector<8x128xf32>
    %213 = arith.mulf %212, %211 : vector<8x128xf32>
    %cst_65 = arith.constant 5.000000e-01 : f32
    %214 = vector.broadcast %cst_65 : f32 to vector<8x128xf32>
    %215 = arith.addf %213, %214 : vector<8x128xf32>
    %216 = math.tanh %208 : vector<8x128xf32>
    %217 = vector.extract_strided_slice %215 {offsets = [0, 0], sizes = [8, 32], strides = [1, 1]} : vector<8x128xf32> to vector<8x32xf32>
    %218 = vector.extract_strided_slice %215 {offsets = [0, 32], sizes = [8, 32], strides = [1, 1]} : vector<8x128xf32> to vector<8x32xf32>
    %219 = vector.extract_strided_slice %216 {offsets = [0, 64], sizes = [8, 32], strides = [1, 1]} : vector<8x128xf32> to vector<8x32xf32>
    %220 = vector.extract_strided_slice %215 {offsets = [0, 96], sizes = [8, 32], strides = [1, 1]} : vector<8x128xf32> to vector<8x32xf32>
    %221 = arith.mulf %218, %171 : vector<8x32xf32>
    %222 = arith.mulf %217, %219 : vector<8x32xf32>
    %223 = arith.addf %221, %222 : vector<8x32xf32>
    %224 = math.tanh %223 : vector<8x32xf32>
    %225 = arith.mulf %220, %224 : vector<8x32xf32>
    %c3_i32 = arith.constant 3 : i32
    %226 = vector.broadcast %c3_i32 : i32 to vector<8x1xi32>
    %227 = arith.cmpi sgt, %6, %226 : vector<8x1xi32>
    %228 = arith.extui %227 : vector<8x1xi1> to vector<8x1xi32>
    %229 = arith.sitofp %228 : vector<8x1xi32> to vector<8x1xf32>
    %230 = vector.broadcast %229 : vector<8x1xf32> to vector<8x32xf32>
    %231 = arith.mulf %225, %230 : vector<8x32xf32>
    %c0_66 = arith.constant 0 : index
    %c96 = arith.constant 96 : index
    %232 = vector.load %arg9[%c0_66, %c96] : memref<8x256xf32, #tpu.memory_space<vmem>>, vector<8x32xf32>
    tpu.vector_store %arg9[%c0_66, %c96], %231 {strides = array<i32>} : memref<8x256xf32, #tpu.memory_space<vmem>>, vector<8x32xf32>,
    %233 = vector.extract_strided_slice %16 {offsets = [32, 0], sizes = [8, 128], strides = [1, 1]} : vector<64x128xf32> to vector<8x128xf32>
    %234 = arith.truncf %201 : vector<8x32xf32> to vector<8x32xbf16>
    %cst_67 = arith.constant dense<0.000000e+00> : vector<8x128xf32>
    %235 = tpu.matmul %234, %0, %cst_67 {dimension_numbers = #tpu.dot_dimension_numbers<[1], [0], [0], [1], [0, 0, 1, 1], [], []>} : vector<8x32xbf16>, vector<32x128xbf16>, vector<8x128xf32> -> vector<8x128xf32>
    %236 = arith.addf %233, %235 : vector<8x128xf32>
    %cst_68 = arith.constant 5.000000e-01 : f32
    %237 = vector.broadcast %cst_68 : f32 to vector<8x128xf32>
    %238 = arith.mulf %237, %236 : vector<8x128xf32>
    %239 = math.tanh %238 : vector<8x128xf32>
    %cst_69 = arith.constant 5.000000e-01 : f32
    %240 = vector.broadcast %cst_69 : f32 to vector<8x128xf32>
    %241 = arith.mulf %240, %239 : vector<8x128xf32>
    %cst_70 = arith.constant 5.000000e-01 : f32
    %242 = vector.broadcast %cst_70 : f32 to vector<8x128xf32>
    %243 = arith.addf %241, %242 : vector<8x128xf32>
    %244 = math.tanh %236 : vector<8x128xf32>
    %245 = vector.extract_strided_slice %243 {offsets = [0, 0], sizes = [8, 32], strides = [1, 1]} : vector<8x128xf32> to vector<8x32xf32>
    %246 = vector.extract_strided_slice %243 {offsets = [0, 32], sizes = [8, 32], strides = [1, 1]} : vector<8x128xf32> to vector<8x32xf32>
    %247 = vector.extract_strided_slice %244 {offsets = [0, 64], sizes = [8, 32], strides = [1, 1]} : vector<8x128xf32> to vector<8x32xf32>
    %248 = vector.extract_strided_slice %243 {offsets = [0, 96], sizes = [8, 32], strides = [1, 1]} : vector<8x128xf32> to vector<8x32xf32>
    %249 = arith.mulf %246, %199 : vector<8x32xf32>
    %250 = arith.mulf %245, %247 : vector<8x32xf32>
    %251 = arith.addf %249, %250 : vector<8x32xf32>
    %252 = math.tanh %251 : vector<8x32xf32>
    %253 = arith.mulf %248, %252 : vector<8x32xf32>
    %254 = arith.truncf %253 : vector<8x32xf32> to vector<8x32xbf16>
    %cst_71 = arith.constant dense<0.000000e+00> : vector<8x128xf32>
    %255 = tpu.matmul %254, %2, %cst_71 {dimension_numbers = #tpu.dot_dimension_numbers<[1], [0], [0], [1], [0, 0, 1, 1], [], []>} : vector<8x32xbf16>, vector<32x128xbf16>, vector<8x128xf32> -> vector<8x128xf32>
    %256 = arith.truncf %225 : vector<8x32xf32> to vector<8x32xbf16>
    %cst_72 = arith.constant dense<0.000000e+00> : vector<8x128xf32>
    %257 = tpu.matmul %256, %3, %cst_72 {dimension_numbers = #tpu.dot_dimension_numbers<[1], [0], [0], [1], [0, 0, 1, 1], [], []>} : vector<8x32xbf16>, vector<32x128xbf16>, vector<8x128xf32> -> vector<8x128xf32>
    %258 = arith.addf %255, %257 : vector<8x128xf32>
    %259 = vector.broadcast %4 : vector<1x128xf32> to vector<8x128xf32>
    %260 = arith.addf %258, %259 : vector<8x128xf32>
    %cst_73 = arith.constant 5.000000e-01 : f32
    %261 = vector.broadcast %cst_73 : f32 to vector<8x128xf32>
    %262 = arith.mulf %261, %260 : vector<8x128xf32>
    %263 = math.tanh %262 : vector<8x128xf32>
    %cst_74 = arith.constant 5.000000e-01 : f32
    %264 = vector.broadcast %cst_74 : f32 to vector<8x128xf32>
    %265 = arith.mulf %264, %263 : vector<8x128xf32>
    %cst_75 = arith.constant 5.000000e-01 : f32
    %266 = vector.broadcast %cst_75 : f32 to vector<8x128xf32>
    %267 = arith.addf %265, %266 : vector<8x128xf32>
    %268 = math.tanh %260 : vector<8x128xf32>
    %269 = vector.extract_strided_slice %267 {offsets = [0, 0], sizes = [8, 32], strides = [1, 1]} : vector<8x128xf32> to vector<8x32xf32>
    %270 = vector.extract_strided_slice %267 {offsets = [0, 32], sizes = [8, 32], strides = [1, 1]} : vector<8x128xf32> to vector<8x32xf32>
    %271 = vector.extract_strided_slice %268 {offsets = [0, 64], sizes = [8, 32], strides = [1, 1]} : vector<8x128xf32> to vector<8x32xf32>
    %272 = vector.extract_strided_slice %267 {offsets = [0, 96], sizes = [8, 32], strides = [1, 1]} : vector<8x128xf32> to vector<8x32xf32>
    %273 = arith.mulf %270, %223 : vector<8x32xf32>
    %274 = arith.mulf %269, %271 : vector<8x32xf32>
    %275 = arith.addf %273, %274 : vector<8x32xf32>
    %276 = math.tanh %275 : vector<8x32xf32>
    %277 = arith.mulf %272, %276 : vector<8x32xf32>
    %c4_i32 = arith.constant 4 : i32
    %278 = vector.broadcast %c4_i32 : i32 to vector<8x1xi32>
    %279 = arith.cmpi sgt, %6, %278 : vector<8x1xi32>
    %280 = arith.extui %279 : vector<8x1xi1> to vector<8x1xi32>
    %281 = arith.sitofp %280 : vector<8x1xi32> to vector<8x1xf32>
    %282 = vector.broadcast %281 : vector<8x1xf32> to vector<8x32xf32>
    %283 = arith.mulf %277, %282 : vector<8x32xf32>
    %c0_76 = arith.constant 0 : index
    %c128 = arith.constant 128 : index
    %284 = vector.load %arg9[%c0_76, %c128] : memref<8x256xf32, #tpu.memory_space<vmem>>, vector<8x32xf32>
    tpu.vector_store %arg9[%c0_76, %c128], %283 {strides = array<i32>} : memref<8x256xf32, #tpu.memory_space<vmem>>, vector<8x32xf32>,
    %285 = vector.extract_strided_slice %16 {offsets = [40, 0], sizes = [8, 128], strides = [1, 1]} : vector<64x128xf32> to vector<8x128xf32>
    %286 = arith.truncf %253 : vector<8x32xf32> to vector<8x32xbf16>
    %cst_77 = arith.constant dense<0.000000e+00> : vector<8x128xf32>
    %287 = tpu.matmul %286, %0, %cst_77 {dimension_numbers = #tpu.dot_dimension_numbers<[1], [0], [0], [1], [0, 0, 1, 1], [], []>} : vector<8x32xbf16>, vector<32x128xbf16>, vector<8x128xf32> -> vector<8x128xf32>
    %288 = arith.addf %285, %287 : vector<8x128xf32>
    %cst_78 = arith.constant 5.000000e-01 : f32
    %289 = vector.broadcast %cst_78 : f32 to vector<8x128xf32>
    %290 = arith.mulf %289, %288 : vector<8x128xf32>
    %291 = math.tanh %290 : vector<8x128xf32>
    %cst_79 = arith.constant 5.000000e-01 : f32
    %292 = vector.broadcast %cst_79 : f32 to vector<8x128xf32>
    %293 = arith.mulf %292, %291 : vector<8x128xf32>
    %cst_80 = arith.constant 5.000000e-01 : f32
    %294 = vector.broadcast %cst_80 : f32 to vector<8x128xf32>
    %295 = arith.addf %293, %294 : vector<8x128xf32>
    %296 = math.tanh %288 : vector<8x128xf32>
    %297 = vector.extract_strided_slice %295 {offsets = [0, 0], sizes = [8, 32], strides = [1, 1]} : vector<8x128xf32> to vector<8x32xf32>
    %298 = vector.extract_strided_slice %295 {offsets = [0, 32], sizes = [8, 32], strides = [1, 1]} : vector<8x128xf32> to vector<8x32xf32>
    %299 = vector.extract_strided_slice %296 {offsets = [0, 64], sizes = [8, 32], strides = [1, 1]} : vector<8x128xf32> to vector<8x32xf32>
    %300 = vector.extract_strided_slice %295 {offsets = [0, 96], sizes = [8, 32], strides = [1, 1]} : vector<8x128xf32> to vector<8x32xf32>
    %301 = arith.mulf %298, %251 : vector<8x32xf32>
    %302 = arith.mulf %297, %299 : vector<8x32xf32>
    %303 = arith.addf %301, %302 : vector<8x32xf32>
    %304 = math.tanh %303 : vector<8x32xf32>
    %305 = arith.mulf %300, %304 : vector<8x32xf32>
    %306 = arith.truncf %305 : vector<8x32xf32> to vector<8x32xbf16>
    %cst_81 = arith.constant dense<0.000000e+00> : vector<8x128xf32>
    %307 = tpu.matmul %306, %2, %cst_81 {dimension_numbers = #tpu.dot_dimension_numbers<[1], [0], [0], [1], [0, 0, 1, 1], [], []>} : vector<8x32xbf16>, vector<32x128xbf16>, vector<8x128xf32> -> vector<8x128xf32>
    %308 = arith.truncf %277 : vector<8x32xf32> to vector<8x32xbf16>
    %cst_82 = arith.constant dense<0.000000e+00> : vector<8x128xf32>
    %309 = tpu.matmul %308, %3, %cst_82 {dimension_numbers = #tpu.dot_dimension_numbers<[1], [0], [0], [1], [0, 0, 1, 1], [], []>} : vector<8x32xbf16>, vector<32x128xbf16>, vector<8x128xf32> -> vector<8x128xf32>
    %310 = arith.addf %307, %309 : vector<8x128xf32>
    %311 = vector.broadcast %4 : vector<1x128xf32> to vector<8x128xf32>
    %312 = arith.addf %310, %311 : vector<8x128xf32>
    %cst_83 = arith.constant 5.000000e-01 : f32
    %313 = vector.broadcast %cst_83 : f32 to vector<8x128xf32>
    %314 = arith.mulf %313, %312 : vector<8x128xf32>
    %315 = math.tanh %314 : vector<8x128xf32>
    %cst_84 = arith.constant 5.000000e-01 : f32
    %316 = vector.broadcast %cst_84 : f32 to vector<8x128xf32>
    %317 = arith.mulf %316, %315 : vector<8x128xf32>
    %cst_85 = arith.constant 5.000000e-01 : f32
    %318 = vector.broadcast %cst_85 : f32 to vector<8x128xf32>
    %319 = arith.addf %317, %318 : vector<8x128xf32>
    %320 = math.tanh %312 : vector<8x128xf32>
    %321 = vector.extract_strided_slice %319 {offsets = [0, 0], sizes = [8, 32], strides = [1, 1]} : vector<8x128xf32> to vector<8x32xf32>
    %322 = vector.extract_strided_slice %319 {offsets = [0, 32], sizes = [8, 32], strides = [1, 1]} : vector<8x128xf32> to vector<8x32xf32>
    %323 = vector.extract_strided_slice %320 {offsets = [0, 64], sizes = [8, 32], strides = [1, 1]} : vector<8x128xf32> to vector<8x32xf32>
    %324 = vector.extract_strided_slice %319 {offsets = [0, 96], sizes = [8, 32], strides = [1, 1]} : vector<8x128xf32> to vector<8x32xf32>
    %325 = arith.mulf %322, %275 : vector<8x32xf32>
    %326 = arith.mulf %321, %323 : vector<8x32xf32>
    %327 = arith.addf %325, %326 : vector<8x32xf32>
    %328 = math.tanh %327 : vector<8x32xf32>
    %329 = arith.mulf %324, %328 : vector<8x32xf32>
    %c5_i32 = arith.constant 5 : i32
    %330 = vector.broadcast %c5_i32 : i32 to vector<8x1xi32>
    %331 = arith.cmpi sgt, %6, %330 : vector<8x1xi32>
    %332 = arith.extui %331 : vector<8x1xi1> to vector<8x1xi32>
    %333 = arith.sitofp %332 : vector<8x1xi32> to vector<8x1xf32>
    %334 = vector.broadcast %333 : vector<8x1xf32> to vector<8x32xf32>
    %335 = arith.mulf %329, %334 : vector<8x32xf32>
    %c0_86 = arith.constant 0 : index
    %c160 = arith.constant 160 : index
    %336 = vector.load %arg9[%c0_86, %c160] : memref<8x256xf32, #tpu.memory_space<vmem>>, vector<8x32xf32>
    tpu.vector_store %arg9[%c0_86, %c160], %335 {strides = array<i32>} : memref<8x256xf32, #tpu.memory_space<vmem>>, vector<8x32xf32>,
    %337 = vector.extract_strided_slice %16 {offsets = [48, 0], sizes = [8, 128], strides = [1, 1]} : vector<64x128xf32> to vector<8x128xf32>
    %338 = arith.truncf %305 : vector<8x32xf32> to vector<8x32xbf16>
    %cst_87 = arith.constant dense<0.000000e+00> : vector<8x128xf32>
    %339 = tpu.matmul %338, %0, %cst_87 {dimension_numbers = #tpu.dot_dimension_numbers<[1], [0], [0], [1], [0, 0, 1, 1], [], []>} : vector<8x32xbf16>, vector<32x128xbf16>, vector<8x128xf32> -> vector<8x128xf32>
    %340 = arith.addf %337, %339 : vector<8x128xf32>
    %cst_88 = arith.constant 5.000000e-01 : f32
    %341 = vector.broadcast %cst_88 : f32 to vector<8x128xf32>
    %342 = arith.mulf %341, %340 : vector<8x128xf32>
    %343 = math.tanh %342 : vector<8x128xf32>
    %cst_89 = arith.constant 5.000000e-01 : f32
    %344 = vector.broadcast %cst_89 : f32 to vector<8x128xf32>
    %345 = arith.mulf %344, %343 : vector<8x128xf32>
    %cst_90 = arith.constant 5.000000e-01 : f32
    %346 = vector.broadcast %cst_90 : f32 to vector<8x128xf32>
    %347 = arith.addf %345, %346 : vector<8x128xf32>
    %348 = math.tanh %340 : vector<8x128xf32>
    %349 = vector.extract_strided_slice %347 {offsets = [0, 0], sizes = [8, 32], strides = [1, 1]} : vector<8x128xf32> to vector<8x32xf32>
    %350 = vector.extract_strided_slice %347 {offsets = [0, 32], sizes = [8, 32], strides = [1, 1]} : vector<8x128xf32> to vector<8x32xf32>
    %351 = vector.extract_strided_slice %348 {offsets = [0, 64], sizes = [8, 32], strides = [1, 1]} : vector<8x128xf32> to vector<8x32xf32>
    %352 = vector.extract_strided_slice %347 {offsets = [0, 96], sizes = [8, 32], strides = [1, 1]} : vector<8x128xf32> to vector<8x32xf32>
    %353 = arith.mulf %350, %303 : vector<8x32xf32>
    %354 = arith.mulf %349, %351 : vector<8x32xf32>
    %355 = arith.addf %353, %354 : vector<8x32xf32>
    %356 = math.tanh %355 : vector<8x32xf32>
    %357 = arith.mulf %352, %356 : vector<8x32xf32>
    %358 = arith.truncf %357 : vector<8x32xf32> to vector<8x32xbf16>
    %cst_91 = arith.constant dense<0.000000e+00> : vector<8x128xf32>
    %359 = tpu.matmul %358, %2, %cst_91 {dimension_numbers = #tpu.dot_dimension_numbers<[1], [0], [0], [1], [0, 0, 1, 1], [], []>} : vector<8x32xbf16>, vector<32x128xbf16>, vector<8x128xf32> -> vector<8x128xf32>
    %360 = arith.truncf %329 : vector<8x32xf32> to vector<8x32xbf16>
    %cst_92 = arith.constant dense<0.000000e+00> : vector<8x128xf32>
    %361 = tpu.matmul %360, %3, %cst_92 {dimension_numbers = #tpu.dot_dimension_numbers<[1], [0], [0], [1], [0, 0, 1, 1], [], []>} : vector<8x32xbf16>, vector<32x128xbf16>, vector<8x128xf32> -> vector<8x128xf32>
    %362 = arith.addf %359, %361 : vector<8x128xf32>
    %363 = vector.broadcast %4 : vector<1x128xf32> to vector<8x128xf32>
    %364 = arith.addf %362, %363 : vector<8x128xf32>
    %cst_93 = arith.constant 5.000000e-01 : f32
    %365 = vector.broadcast %cst_93 : f32 to vector<8x128xf32>
    %366 = arith.mulf %365, %364 : vector<8x128xf32>
    %367 = math.tanh %366 : vector<8x128xf32>
    %cst_94 = arith.constant 5.000000e-01 : f32
    %368 = vector.broadcast %cst_94 : f32 to vector<8x128xf32>
    %369 = arith.mulf %368, %367 : vector<8x128xf32>
    %cst_95 = arith.constant 5.000000e-01 : f32
    %370 = vector.broadcast %cst_95 : f32 to vector<8x128xf32>
    %371 = arith.addf %369, %370 : vector<8x128xf32>
    %372 = math.tanh %364 : vector<8x128xf32>
    %373 = vector.extract_strided_slice %371 {offsets = [0, 0], sizes = [8, 32], strides = [1, 1]} : vector<8x128xf32> to vector<8x32xf32>
    %374 = vector.extract_strided_slice %371 {offsets = [0, 32], sizes = [8, 32], strides = [1, 1]} : vector<8x128xf32> to vector<8x32xf32>
    %375 = vector.extract_strided_slice %372 {offsets = [0, 64], sizes = [8, 32], strides = [1, 1]} : vector<8x128xf32> to vector<8x32xf32>
    %376 = vector.extract_strided_slice %371 {offsets = [0, 96], sizes = [8, 32], strides = [1, 1]} : vector<8x128xf32> to vector<8x32xf32>
    %377 = arith.mulf %374, %327 : vector<8x32xf32>
    %378 = arith.mulf %373, %375 : vector<8x32xf32>
    %379 = arith.addf %377, %378 : vector<8x32xf32>
    %380 = math.tanh %379 : vector<8x32xf32>
    %381 = arith.mulf %376, %380 : vector<8x32xf32>
    %c6_i32 = arith.constant 6 : i32
    %382 = vector.broadcast %c6_i32 : i32 to vector<8x1xi32>
    %383 = arith.cmpi sgt, %6, %382 : vector<8x1xi32>
    %384 = arith.extui %383 : vector<8x1xi1> to vector<8x1xi32>
    %385 = arith.sitofp %384 : vector<8x1xi32> to vector<8x1xf32>
    %386 = vector.broadcast %385 : vector<8x1xf32> to vector<8x32xf32>
    %387 = arith.mulf %381, %386 : vector<8x32xf32>
    %c0_96 = arith.constant 0 : index
    %c192 = arith.constant 192 : index
    %388 = vector.load %arg9[%c0_96, %c192] : memref<8x256xf32, #tpu.memory_space<vmem>>, vector<8x32xf32>
    tpu.vector_store %arg9[%c0_96, %c192], %387 {strides = array<i32>} : memref<8x256xf32, #tpu.memory_space<vmem>>, vector<8x32xf32>,
    %389 = vector.extract_strided_slice %16 {offsets = [56, 0], sizes = [8, 128], strides = [1, 1]} : vector<64x128xf32> to vector<8x128xf32>
    %390 = arith.truncf %357 : vector<8x32xf32> to vector<8x32xbf16>
    %cst_97 = arith.constant dense<0.000000e+00> : vector<8x128xf32>
    %391 = tpu.matmul %390, %0, %cst_97 {dimension_numbers = #tpu.dot_dimension_numbers<[1], [0], [0], [1], [0, 0, 1, 1], [], []>} : vector<8x32xbf16>, vector<32x128xbf16>, vector<8x128xf32> -> vector<8x128xf32>
    %392 = arith.addf %389, %391 : vector<8x128xf32>
    %cst_98 = arith.constant 5.000000e-01 : f32
    %393 = vector.broadcast %cst_98 : f32 to vector<8x128xf32>
    %394 = arith.mulf %393, %392 : vector<8x128xf32>
    %395 = math.tanh %394 : vector<8x128xf32>
    %cst_99 = arith.constant 5.000000e-01 : f32
    %396 = vector.broadcast %cst_99 : f32 to vector<8x128xf32>
    %397 = arith.mulf %396, %395 : vector<8x128xf32>
    %cst_100 = arith.constant 5.000000e-01 : f32
    %398 = vector.broadcast %cst_100 : f32 to vector<8x128xf32>
    %399 = arith.addf %397, %398 : vector<8x128xf32>
    %400 = math.tanh %392 : vector<8x128xf32>
    %401 = vector.extract_strided_slice %399 {offsets = [0, 0], sizes = [8, 32], strides = [1, 1]} : vector<8x128xf32> to vector<8x32xf32>
    %402 = vector.extract_strided_slice %399 {offsets = [0, 32], sizes = [8, 32], strides = [1, 1]} : vector<8x128xf32> to vector<8x32xf32>
    %403 = vector.extract_strided_slice %400 {offsets = [0, 64], sizes = [8, 32], strides = [1, 1]} : vector<8x128xf32> to vector<8x32xf32>
    %404 = vector.extract_strided_slice %399 {offsets = [0, 96], sizes = [8, 32], strides = [1, 1]} : vector<8x128xf32> to vector<8x32xf32>
    %405 = arith.mulf %402, %355 : vector<8x32xf32>
    %406 = arith.mulf %401, %403 : vector<8x32xf32>
    %407 = arith.addf %405, %406 : vector<8x32xf32>
    %408 = math.tanh %407 : vector<8x32xf32>
    %409 = arith.mulf %404, %408 : vector<8x32xf32>
    %410 = arith.truncf %409 : vector<8x32xf32> to vector<8x32xbf16>
    %cst_101 = arith.constant dense<0.000000e+00> : vector<8x128xf32>
    %411 = tpu.matmul %410, %2, %cst_101 {dimension_numbers = #tpu.dot_dimension_numbers<[1], [0], [0], [1], [0, 0, 1, 1], [], []>} : vector<8x32xbf16>, vector<32x128xbf16>, vector<8x128xf32> -> vector<8x128xf32>
    %412 = arith.truncf %381 : vector<8x32xf32> to vector<8x32xbf16>
    %cst_102 = arith.constant dense<0.000000e+00> : vector<8x128xf32>
    %413 = tpu.matmul %412, %3, %cst_102 {dimension_numbers = #tpu.dot_dimension_numbers<[1], [0], [0], [1], [0, 0, 1, 1], [], []>} : vector<8x32xbf16>, vector<32x128xbf16>, vector<8x128xf32> -> vector<8x128xf32>
    %414 = arith.addf %411, %413 : vector<8x128xf32>
    %415 = vector.broadcast %4 : vector<1x128xf32> to vector<8x128xf32>
    %416 = arith.addf %414, %415 : vector<8x128xf32>
    %cst_103 = arith.constant 5.000000e-01 : f32
    %417 = vector.broadcast %cst_103 : f32 to vector<8x128xf32>
    %418 = arith.mulf %417, %416 : vector<8x128xf32>
    %419 = math.tanh %418 : vector<8x128xf32>
    %cst_104 = arith.constant 5.000000e-01 : f32
    %420 = vector.broadcast %cst_104 : f32 to vector<8x128xf32>
    %421 = arith.mulf %420, %419 : vector<8x128xf32>
    %cst_105 = arith.constant 5.000000e-01 : f32
    %422 = vector.broadcast %cst_105 : f32 to vector<8x128xf32>
    %423 = arith.addf %421, %422 : vector<8x128xf32>
    %424 = math.tanh %416 : vector<8x128xf32>
    %425 = vector.extract_strided_slice %423 {offsets = [0, 0], sizes = [8, 32], strides = [1, 1]} : vector<8x128xf32> to vector<8x32xf32>
    %426 = vector.extract_strided_slice %423 {offsets = [0, 32], sizes = [8, 32], strides = [1, 1]} : vector<8x128xf32> to vector<8x32xf32>
    %427 = vector.extract_strided_slice %424 {offsets = [0, 64], sizes = [8, 32], strides = [1, 1]} : vector<8x128xf32> to vector<8x32xf32>
    %428 = vector.extract_strided_slice %423 {offsets = [0, 96], sizes = [8, 32], strides = [1, 1]} : vector<8x128xf32> to vector<8x32xf32>
    %429 = arith.mulf %426, %379 : vector<8x32xf32>
    %430 = arith.mulf %425, %427 : vector<8x32xf32>
    %431 = arith.addf %429, %430 : vector<8x32xf32>
    %432 = math.tanh %431 : vector<8x32xf32>
    %433 = arith.mulf %428, %432 : vector<8x32xf32>
    %c7_i32 = arith.constant 7 : i32
    %434 = vector.broadcast %c7_i32 : i32 to vector<8x1xi32>
    %435 = arith.cmpi sgt, %6, %434 : vector<8x1xi32>
    %436 = arith.extui %435 : vector<8x1xi1> to vector<8x1xi32>
    %437 = arith.sitofp %436 : vector<8x1xi32> to vector<8x1xf32>
    %438 = vector.broadcast %437 : vector<8x1xf32> to vector<8x32xf32>
    %439 = arith.mulf %433, %438 : vector<8x32xf32>
    %c0_106 = arith.constant 0 : index
    %c224 = arith.constant 224 : index
    %440 = vector.load %arg9[%c0_106, %c224] : memref<8x256xf32, #tpu.memory_space<vmem>>, vector<8x32xf32>
    tpu.vector_store %arg9[%c0_106, %c224], %439 {strides = array<i32>} : memref<8x256xf32, #tpu.memory_space<vmem>>, vector<8x32xf32>,
    return
  }
}

</mosaic_0001>

<llo_original>
// kernel: sequence_embedding_forward.1
$region0: #{sequence_embedding_forward.1}
  #allocation0 [shape = 'u32[]', space=smem, size = 0x4, offset = 0x4, fixed_abs, tag = 'smem constant byte address 0x4 - core index']
  #allocation1 [shape = 'u32[144,128]{1,0:T(1,128)}', space=vmem, size = 0x12000, scoped, tag = 'internal scratch']
  %s0 = inlined_call_operand.vmem [shape: s32[64,1], index: 0, kind: input, shape index: {}]
  %s1 = inlined_call_operand.vmem [shape: s32[8,1], index: 1, kind: input, shape index: {}]
  %s2 = inlined_call_operand.vmem [shape: f32[2,8,32], index: 2, kind: input, shape index: {}]
  %s3 = inlined_call_operand.vmem [shape: bf16[16,128], index: 3, kind: input, shape index: {}]
  %s4 = inlined_call_operand.vmem [shape: f32[1,128], index: 4, kind: input, shape index: {}]
  %s5 = inlined_call_operand.vmem [shape: bf16[32,128], index: 5, kind: input, shape index: {}]
  %s6 = inlined_call_operand.vmem [shape: bf16[32,128], index: 6, kind: input, shape index: {}]
  %s7 = inlined_call_operand.vmem [shape: bf16[32,128], index: 7, kind: input, shape index: {}]
  %s8 = inlined_call_operand.vmem [shape: f32[1,128], index: 8, kind: input, shape index: {}]
  %s9 = inlined_call_operand.vmem [shape: f32[8,256], index: 9, kind: output, shape index: {}]
  %s10 = sld [smem:[#allocation0]]
  $region46: #{sequence_embedding_forward.1} parent=0
    _
  %s12 = ssub.s32 1, %s10
  %s13 = scalar_select 0, %s12, %s10
  // Predicated region
  $region2: #{sequence_embedding_forward.1} parent=0 // pred_check
    _
  $region3: #{sequence_embedding_forward.1} parent=0 // pred_check_branch
    %15 = sbr.rel (0) target = $region5
  $region4: #{sequence_embedding_forward.1} parent=0 // pred_region
    _
  $region5: #{sequence_embedding_forward.1} parent=0 // pred_fallthru
    _
  // Predicated region
  $region6: #{sequence_embedding_forward.1} parent=0 // pred_check
    _
  $region7: #{sequence_embedding_forward.1} parent=0 // pred_check_branch
    %17 = sbr.rel (0) target = $region9
  $region8: #{sequence_embedding_forward.1} parent=0 // pred_region
    _
  $region9: #{sequence_embedding_forward.1} parent=0 // pred_fallthru
    _
  // Predicated region
  $region10: #{sequence_embedding_forward.1} parent=0 // pred_check
    _
  $region11: #{sequence_embedding_forward.1} parent=0 // pred_check_branch
    %19 = sbr.rel (0) target = $region13
  $region12: #{sequence_embedding_forward.1} parent=0 // pred_region
    _
  $region13: #{sequence_embedding_forward.1} parent=0 // pred_fallthru
    _
  // Predicated region
  $region14: #{sequence_embedding_forward.1} parent=0 // pred_check
    _
  $region15: #{sequence_embedding_forward.1} parent=0 // pred_check_branch
    %21 = sbr.rel (0) target = $region17
  $region16: #{sequence_embedding_forward.1} parent=0 // pred_region
    _
  $region17: #{sequence_embedding_forward.1} parent=0 // pred_fallthru
    _
  // Predicated region
  $region18: #{sequence_embedding_forward.1} parent=0 // pred_check
    _
  $region19: #{sequence_embedding_forward.1} parent=0 // pred_check_branch
    %23 = sbr.rel (0) target = $region21
  $region20: #{sequence_embedding_forward.1} parent=0 // pred_region
    _
  $region21: #{sequence_embedding_forward.1} parent=0 // pred_fallthru
    _
  // Predicated region
  $region22: #{sequence_embedding_forward.1} parent=0 // pred_check
    _
  $region23: #{sequence_embedding_forward.1} parent=0 // pred_check_branch
    %25 = sbr.rel (0) target = $region25
  $region24: #{sequence_embedding_forward.1} parent=0 // pred_region
    _
  $region25: #{sequence_embedding_forward.1} parent=0 // pred_fallthru
    _
  // Predicated region
  $region26: #{sequence_embedding_forward.1} parent=0 // pred_check
    _
  $region27: #{sequence_embedding_forward.1} parent=0 // pred_check_branch
    %27 = sbr.rel (0) target = $region29
  $region28: #{sequence_embedding_forward.1} parent=0 // pred_region
    _
  $region29: #{sequence_embedding_forward.1} parent=0 // pred_fallthru
    _
  // Predicated region
  $region30: #{sequence_embedding_forward.1} parent=0 // pred_check
    _
  $region31: #{sequence_embedding_forward.1} parent=0 // pred_check_branch
    %29 = sbr.rel (0) target = $region33
  $region32: #{sequence_embedding_forward.1} parent=0 // pred_region
    _
  $region33: #{sequence_embedding_forward.1} parent=0 // pred_fallthru
    _
  // Predicated region
  $region34: #{sequence_embedding_forward.1} parent=0 // pred_check
    _
  $region35: #{sequence_embedding_forward.1} parent=0 // pred_check_branch
    %31 = sbr.rel (0) target = $region37
  $region36: #{sequence_embedding_forward.1} parent=0 // pred_region
    _
  $region37: #{sequence_embedding_forward.1} parent=0 // pred_fallthru
    _
  %v33 = vld [vmem:[%s5] sm:$0xf]
  %v34 = vld [vmem:[%s5 + $0x4] sm:$0xf]
  %v35 = vld [vmem:[%s5 + $0x8] sm:$0xf]
  %v36 = vld [vmem:[%s5 + $0xc] sm:$0xf]
  %v37 = vld [vmem:[%s4] sm:$0x1]
  %v38 = vld [vmem:[%s6] sm:$0xf]
  %v39 = vld [vmem:[%s6 + $0x4] sm:$0xf]
  %v40 = vld [vmem:[%s6 + $0x8] sm:$0xf]
  %v41 = vld [vmem:[%s6 + $0xc] sm:$0xf]
  %v42 = vld [vmem:[%s7] sm:$0xf]
  %v43 = vld [vmem:[%s7 + $0x4] sm:$0xf]
  %v44 = vld [vmem:[%s7 + $0x8] sm:$0xf]
  %v45 = vld [vmem:[%s7 + $0xc] sm:$0xf]
  %v46 = vld [vmem:[%s8] sm:$0x1]
  %v47 = vld [vmem:[%s0] sm:$0xff]
  %v48 = vld [vmem:[%s0 + $0x8] sm:$0xff]
  %v49 = vld [vmem:[%s0 + $0x10] sm:$0xff]
  %v50 = vld [vmem:[%s0 + $0x18] sm:$0xff]
  %v51 = vld [vmem:[%s0 + $0x20] sm:$0xff]
  %v52 = vld [vmem:[%s0 + $0x28] sm:$0xff]
  %v53 = vld [vmem:[%s0 + $0x30] sm:$0xff]
  %v54 = vld [vmem:[%s0 + $0x38] sm:$0xff]
  %v55 = vld [vmem:[%s1] sm:$0xff]
  %v56 = vlaneseq
  %v57 = vand.u32 %v56, 127
  %58 = vset.pattern.permute.xlu0 0
  %59 = vperm.xlu0 %58, %v47
  %v60 = vpop.permute.xlu0 %59
  %61 = vset.pattern.permute.xlu0 0
  %62 = vperm.xlu0 %61, %v48
  %v63 = vpop.permute.xlu0 %62
  %64 = vset.pattern.permute.xlu0 0
  %65 = vperm.xlu0 %64, %v49
  %v66 = vpop.permute.xlu0 %65
  %67 = vset.pattern.permute.xlu0 0
  %68 = vperm.xlu0 %67, %v50
  %v69 = vpop.permute.xlu0 %68
  %70 = vset.pattern.permute.xlu0 0
  %71 = vperm.xlu0 %70, %v51
  %v72 = vpop.permute.xlu0 %71
  %73 = vset.pattern.permute.xlu0 0
  %74 = vperm.xlu0 %73, %v52
  %v75 = vpop.permute.xlu0 %74
  %76 = vset.pattern.permute.xlu0 0
  %77 = vperm.xlu0 %76, %v53
  %v78 = vpop.permute.xlu0 %77
  %79 = vset.pattern.permute.xlu0 0
  %80 = vperm.xlu0 %79, %v54
  %v81 = vpop.permute.xlu0 %80
  %vm82 = vcmp.eq.s32.totalorder %v57, %v60
  %vm83 = vcmp.eq.s32.totalorder %v57, %v63
  %vm84 = vcmp.eq.s32.totalorder %v57, %v66
  %vm85 = vcmp.eq.s32.totalorder %v57, %v69
  %vm86 = vcmp.eq.s32.totalorder %v57, %v72
  %vm87 = vcmp.eq.s32.totalorder %v57, %v75
  %vm88 = vcmp.eq.s32.totalorder %v57, %v78
  %vm89 = vcmp.eq.s32.totalorder %v57, %v81
  %v90 = vsel %vm82, 1, 0
  %v91 = vsel %vm83, 1, 0
  %v92 = vsel %vm84, 1, 0
  %v93 = vsel %vm85, 1, 0
  %v94 = vsel %vm86, 1, 0
  %v95 = vsel %vm87, 1, 0
  %v96 = vsel %vm88, 1, 0
  %v97 = vsel %vm89, 1, 0
  %v98 = vcvt.s32.f32 %v90
  %v99 = vcvt.s32.f32 %v91
  %v100 = vcvt.s32.f32 %v92
  %v101 = vcvt.s32.f32 %v93
  %v102 = vcvt.s32.f32 %v94
  %v103 = vcvt.s32.f32 %v95
  %v104 = vcvt.s32.f32 %v96
  %v105 = vcvt.s32.f32 %v97
  %v106 = vpack.c.bf16 %v99, %v98
  %v107 = vpack.c.bf16 %v101, %v100
  %v108 = vpack.c.bf16 %v103, %v102
  %v109 = vpack.c.bf16 %v105, %v104
  %v110 = vld [vmem:[%s3] sm:$0xf]
  %v111 = vld [vmem:[%s3 + $0x4] sm:$0xf]
  %v113 = vlaneseq
  %v114 = vshrl.u32 %v113, 7
  %v115 = vsub.s32 0, %v114
  %v116 = vrot.slane %v37, %v115
  %v120 = vunpack.c.l.b16 %v110
  %v121 = vunpack.c.l.b16 %v111
  %v122 = vpack.c.b16 %v121, %v120
  %vm124 = vcmask 130048
  %v126 = vsel %vm124, %v106, 0
  %v129 = vsel %vm124, %v107, 0
  %v132 = vsel %vm124, %v108, 0
  %v135 = vsel %vm124, %v109, 0
  %137 = vmatprep.subr.bf16.mxu0 0
  %138 = vmatpush1.bf16.msra.mxu0 0
  %139 = vmatprep.subr.bf16.mxu0 0
  %140 = vmatpush1.bf16.msra.mxu0 0
  %141 = vmatprep.subr.bf16.mxu0 0
  %142 = vmatpush1.bf16.msra.mxu0 0
  %143 = vmatprep.subr.bf16.mxu0 0
  %144 = vmatpush1.bf16.msra.mxu0 0
  %145 = vmatprep.subr.bf16.mxu0 0
  %146 = vmatpush1.bf16.msra.mxu0 0
  %147 = vmatprep.subr.bf16.mxu0 0
  %148 = vmatpush1.bf16.msra.mxu0 0
  %149 = vmatprep.subr.bf16.mxu0 0
  %150 = vmatpush1.bf16.msra.mxu0 0
  %151 = vmatprep.subr.bf16.mxu0 0
  %152 = vmatpush1.bf16.msra.mxu0 %v122
  %153 = vmatprep.subr.bf16.mxu0 0
  %154 = vmatpush2.bf16.msra.mxu0 0
  %155 = vmatprep.subr.bf16.mxu0 0
  %156 = vmatpush2.bf16.msra.mxu0 0
  %157 = vmatprep.subr.bf16.mxu0 0
  %158 = vmatpush2.bf16.msra.mxu0 0
  %159 = vmatprep.subr.bf16.mxu0 0
  %160 = vmatpush2.bf16.msra.mxu0 0
  %161 = vmatprep.subr.bf16.mxu0 0
  %162 = vmatpush2.bf16.msra.mxu0 0
  %163 = vmatprep.subr.bf16.mxu0 0
  %164 = vmatpush2.bf16.msra.mxu0 0
  %165 = vmatprep.subr.bf16.mxu0 0
  %166 = vmatpush2.bf16.msra.mxu0 0
  %167 = vmatprep.subr.bf16.mxu0 0
  %168 = vmatpush2.bf16.msra.mxu0 0
  %169 = vmatprep.mubr.bf16.mxu0 0
  %170 = vmatmul.mubr.bf16.gmra.mxu0 %v126
  %v171 = vpop.f32.mrf.mxu0
  %v172 = vadd.f32 %v116, %v171
  %v173 = vpop.f32.mrf.mxu0
  %v174 = vpop.f32.mrf.mxu0
  %v175 = vadd.f32 %v116, %v174
  %v176 = vpop.f32.mrf.mxu0
  %177 = vmatprep.mubr.bf16.mxu0 0
  %178 = vmatmul.mubr.bf16.gmra.mxu0 %v129
  %v179 = vpop.f32.mrf.mxu0
  %v180 = vadd.f32 %v116, %v179
  %v181 = vpop.f32.mrf.mxu0
  %v182 = vpop.f32.mrf.mxu0
  %v183 = vadd.f32 %v116, %v182
  %v184 = vpop.f32.mrf.mxu0
  %185 = vmatprep.mubr.bf16.mxu0 0
  %186 = vmatmul.mubr.bf16.gmra.mxu0 %v132
  %v187 = vpop.f32.mrf.mxu0
  %v188 = vadd.f32 %v116, %v187
  %v189 = vpop.f32.mrf.mxu0
  %v190 = vpop.f32.mrf.mxu0
  %v191 = vadd.f32 %v116, %v190
  %v192 = vpop.f32.mrf.mxu0
  %193 = vmatprep.mubr.bf16.mxu0 0
  %194 = vmatmul.mubr.bf16.gmra.mxu0 %v135
  %v195 = vpop.f32.mrf.mxu0
  %v196 = vadd.f32 %v116, %v195
  %v197 = vpop.f32.mrf.mxu0
  %v198 = vpop.f32.mrf.mxu0
  %v199 = vadd.f32 %v116, %v198
  %v200 = vpop.f32.mrf.mxu0
  %201 = vdwg.mxu0
  %v202 = vld [vmem:[%s2] sm:$0xff]
  %s203 = scalar_lea.vmem %s2, 8
  %v204 = vld [vmem:[%s203] sm:$0xff]
  %v205 = vpack.c.bf16 %v202, %v202
  %v210 = vunpack.c.l.b16 %v33
  %v211 = vunpack.c.l.b16 %v34
  %v212 = vunpack.c.l.b16 %v35
  %v213 = vunpack.c.l.b16 %v36
  %v214 = vpack.c.b16 %v211, %v210
  %v215 = vpack.c.b16 %v213, %v212
  %vm218 = vcmask 261120
  %v220 = vsel %vm218, %v205, 0
  %222 = vmatprep.subr.bf16.mxu0 0
  %223 = vmatpush1.bf16.msra.mxu0 0
  %224 = vmatprep.subr.bf16.mxu0 0
  %225 = vmatpush1.bf16.msra.mxu0 0
  %226 = vmatprep.subr.bf16.mxu0 0
  %227 = vmatpush1.bf16.msra.mxu0 0
  %228 = vmatprep.subr.bf16.mxu0 0
  %229 = vmatpush1.bf16.msra.mxu0 0
  %230 = vmatprep.subr.bf16.mxu0 0
  %231 = vmatpush1.bf16.msra.mxu0 0
  %232 = vmatprep.subr.bf16.mxu0 0
  %233 = vmatpush1.bf16.msra.mxu0 0
  %234 = vmatprep.subr.bf16.mxu0 0
  %235 = vmatpush1.bf16.msra.mxu0 %v215
  %236 = vmatprep.subr.bf16.mxu0 0
  %237 = vmatpush1.bf16.msra.mxu0 %v214
  %238 = vmatprep.subr.bf16.mxu0 0
  %239 = vmatpush2.bf16.msra.mxu0 0
  %240 = vmatprep.subr.bf16.mxu0 0
  %241 = vmatpush2.bf16.msra.mxu0 0
  %242 = vmatprep.subr.bf16.mxu0 0
  %243 = vmatpush2.bf16.msra.mxu0 0
  %244 = vmatprep.subr.bf16.mxu0 0
  %245 = vmatpush2.bf16.msra.mxu0 0
  %246 = vmatprep.subr.bf16.mxu0 0
  %247 = vmatpush2.bf16.msra.mxu0 0
  %248 = vmatprep.subr.bf16.mxu0 0
  %249 = vmatpush2.bf16.msra.mxu0 0
  %250 = vmatprep.subr.bf16.mxu0 0
  %251 = vmatpush2.bf16.msra.mxu0 0
  %252 = vmatprep.subr.bf16.mxu0 0
  %253 = vmatpush2.bf16.msra.mxu0 0
  %254 = vmatprep.mubr.bf16.mxu0 0
  %255 = vmatmul.mubr.bf16.gmra.mxu0 %v220
  %v256 = vpop.f32.mrf.mxu0
  %v257 = vadd.f32 0.0, %v256
  %v258 = vpop.f32.mrf.mxu0
  %v259 = vpop.f32.mrf.mxu0
  %v260 = vpop.f32.mrf.mxu0
  %261 = vdwg.mxu0
  %v262 = vadd.f32 %v172, %v257
  %v263 = vmul.f32 %v262, 0.5
  %v264 = vtanh.pop %v263
  %v265 = vmul.f32 %v264, 0.5
  %v266 = vadd.f32 %v265, 0.5
  %v267 = vtanh.pop %v262
  %269 = vrot.lane.b32.xlu0 %v202, 32
  %v270 = vpop.permute.xlu0 %269
  %v272 = vmul.f32 %v266, %v270
  %274 = vrot.lane.b32.xlu0 %v267, 64
  %v275 = vpop.permute.xlu0 %274
  %v277 = vmul.f32 %v266, %v275
  %279 = vrot.lane.b32.xlu0 %v277, 32
  %v280 = vpop.permute.xlu0 %279
  %v282 = vadd.f32 %v272, %v280
  %v283 = vtanh.pop %v282
  %285 = vrot.lane.b32.xlu0 %v283, 64
  %v286 = vpop.permute.xlu0 %285
  %v288 = vmul.f32 %v266, %v286
  %v289 = vpack.c.bf16 %v288, %v288
  %v290 = vpack.c.bf16 %v204, %v204
  %v295 = vunpack.c.l.b16 %v42
  %v296 = vunpack.c.l.b16 %v43
  %v297 = vunpack.c.l.b16 %v44
  %v298 = vunpack.c.l.b16 %v45
  %v299 = vpack.c.b16 %v296, %v295
  %v300 = vpack.c.b16 %v298, %v297
  %v304 = vsel %vm218, %v290, 0
  %306 = vmatprep.subr.bf16.mxu0 0
  %307 = vmatpush1.bf16.msra.mxu0 0
  %308 = vmatprep.subr.bf16.mxu0 0
  %309 = vmatpush1.bf16.msra.mxu0 0
  %310 = vmatprep.subr.bf16.mxu0 0
  %311 = vmatpush1.bf16.msra.mxu0 0
  %312 = vmatprep.subr.bf16.mxu0 0
  %313 = vmatpush1.bf16.msra.mxu0 0
  %314 = vmatprep.subr.bf16.mxu0 0
  %315 = vmatpush1.bf16.msra.mxu0 0
  %316 = vmatprep.subr.bf16.mxu0 0
  %317 = vmatpush1.bf16.msra.mxu0 0
  %318 = vmatprep.subr.bf16.mxu0 0
  %319 = vmatpush1.bf16.msra.mxu0 %v300
  %320 = vmatprep.subr.bf16.mxu0 0
  %321 = vmatpush1.bf16.msra.mxu0 %v299
  %322 = vmatprep.subr.bf16.mxu0 0
  %323 = vmatpush2.bf16.msra.mxu0 0
  %324 = vmatprep.subr.bf16.mxu0 0
  %325 = vmatpush2.bf16.msra.mxu0 0
  %326 = vmatprep.subr.bf16.mxu0 0
  %327 = vmatpush2.bf16.msra.mxu0 0
  %328 = vmatprep.subr.bf16.mxu0 0
  %329 = vmatpush2.bf16.msra.mxu0 0
  %330 = vmatprep.subr.bf16.mxu0 0
  %331 = vmatpush2.bf16.msra.mxu0 0
  %332 = vmatprep.subr.bf16.mxu0 0
  %333 = vmatpush2.bf16.msra.mxu0 0
  %334 = vmatprep.subr.bf16.mxu0 0
  %335 = vmatpush2.bf16.msra.mxu0 0
  %336 = vmatprep.subr.bf16.mxu0 0
  %337 = vmatpush2.bf16.msra.mxu0 0
  %338 = vmatprep.mubr.bf16.mxu0 0
  %339 = vmatmul.mubr.bf16.gmra.mxu0 %v304
  %v340 = vpop.f32.mrf.mxu0
  %v341 = vadd.f32 0.0, %v340
  %v342 = vpop.f32.mrf.mxu0
  %v343 = vpop.f32.mrf.mxu0
  %v344 = vpop.f32.mrf.mxu0
  %345 = vdwg.mxu0
  %347 = vrot.lane.b32.xlu0 %v289, 32
  %v348 = vpop.permute.xlu0 %347
  %v353 = vunpack.c.l.b16 %v38
  %v354 = vunpack.c.l.b16 %v39
  %v355 = vunpack.c.l.b16 %v40
  %v356 = vunpack.c.l.b16 %v41
  %v357 = vpack.c.b16 %v354, %v353
  %v358 = vpack.c.b16 %v356, %v355
  %v362 = vsel %vm218, %v348, 0
  %364 = vmatprep.subr.bf16.mxu0 0
  %365 = vmatpush1.bf16.msra.mxu0 0
  %366 = vmatprep.subr.bf16.mxu0 0
  %367 = vmatpush1.bf16.msra.mxu0 0
  %368 = vmatprep.subr.bf16.mxu0 0
  %369 = vmatpush1.bf16.msra.mxu0 0
  %370 = vmatprep.subr.bf16.mxu0 0
  %371 = vmatpush1.bf16.msra.mxu0 0
  %372 = vmatprep.subr.bf16.mxu0 0
  %373 = vmatpush1.bf16.msra.mxu0 0
  %374 = vmatprep.subr.bf16.mxu0 0
  %375 = vmatpush1.bf16.msra.mxu0 0
  %376 = vmatprep.subr.bf16.mxu0 0
  %377 = vmatpush1.bf16.msra.mxu0 %v358
  %378 = vmatprep.subr.bf16.mxu0 0
  %379 = vmatpush1.bf16.msra.mxu0 %v357
  %380 = vmatprep.subr.bf16.mxu0 0
  %381 = vmatpush2.bf16.msra.mxu0 0
  %382 = vmatprep.subr.bf16.mxu0 0
  %383 = vmatpush2.bf16.msra.mxu0 0
  %384 = vmatprep.subr.bf16.mxu0 0
  %385 = vmatpush2.bf16.msra.mxu0 0
  %386 = vmatprep.subr.bf16.mxu0 0
  %387 = vmatpush2.bf16.msra.mxu0 0
  %388 = vmatprep.subr.bf16.mxu0 0
  %389 = vmatpush2.bf16.msra.mxu0 0
  %390 = vmatprep.subr.bf16.mxu0 0
  %391 = vmatpush2.bf16.msra.mxu0 0
  %392 = vmatprep.subr.bf16.mxu0 0
  %393 = vmatpush2.bf16.msra.mxu0 0
  %394 = vmatprep.subr.bf16.mxu0 0
  %395 = vmatpush2.bf16.msra.mxu0 0
  %396 = vmatprep.mubr.bf16.mxu0 0
  %397 = vmatmul.mubr.bf16.gmra.mxu0 %v362
  %v398 = vpop.f32.mrf.mxu0
  %v399 = vadd.f32 %v341, %v398
  %v400 = vpop.f32.mrf.mxu0
  %v401 = vpop.f32.mrf.mxu0
  %v402 = vpop.f32.mrf.mxu0
  %403 = vdwg.mxu0
  %v405 = vlaneseq
  %v406 = vshrl.u32 %v405, 7
  %v407 = vsub.s32 0, %v406
  %v408 = vrot.slane %v46, %v407
  %v410 = vadd.f32 %v399, %v408
  %v411 = vmul.f32 %v410, 0.5
  %v412 = vtanh.pop %v411
  %v413 = vmul.f32 %v412, 0.5
  %v414 = vadd.f32 %v413, 0.5
  %v415 = vtanh.pop %v410
  %417 = vrot.lane.b32.xlu0 %v204, 32
  %v418 = vpop.permute.xlu0 %417
  %v420 = vmul.f32 %v414, %v418
  %422 = vrot.lane.b32.xlu0 %v415, 64
  %v423 = vpop.permute.xlu0 %422
  %v425 = vmul.f32 %v414, %v423
  %427 = vrot.lane.b32.xlu0 %v425, 32
  %v428 = vpop.permute.xlu0 %427
  %v430 = vadd.f32 %v420, %v428
  %v431 = vtanh.pop %v430
  %433 = vrot.lane.b32.xlu0 %v431, 64
  %v434 = vpop.permute.xlu0 %433
  %v436 = vmul.f32 %v414, %v434
  %vm437 = vcmp.gt.s32.totalorder %v55, 0
  %v438 = vsel %vm437, 1, 0
  %v439 = vcvt.s32.f32 %v438
  %441 = vset.pattern.permute.xlu0 0
  %442 = vperm.xlu0 %441, %v439
  %v443 = vpop.permute.xlu0 %442
  %v445 = vmul.f32 %v436, %v443
  %447 = vrot.lane.b32.xlu0 %v445, 32
  %v448 = vpop.permute.xlu0 %447
  %450 = vst.msk [vmem:[%s9] sm:$0xff] %vm218, %v448
  %451 = vmatprep.subr.bf16.mxu0 0
  %452 = vmatpush1.bf16.msra.mxu0 0
  %453 = vmatprep.subr.bf16.mxu0 0
  %454 = vmatpush1.bf16.msra.mxu0 0
  %455 = vmatprep.subr.bf16.mxu0 0
  %456 = vmatpush1.bf16.msra.mxu0 0
  %457 = vmatprep.subr.bf16.mxu0 0
  %458 = vmatpush1.bf16.msra.mxu0 0
  %459 = vmatprep.subr.bf16.mxu0 0
  %460 = vmatpush1.bf16.msra.mxu0 0
  %461 = vmatprep.subr.bf16.mxu0 0
  %462 = vmatpush1.bf16.msra.mxu0 0
  %463 = vmatprep.subr.bf16.mxu0 0
  %464 = vmatpush1.bf16.msra.mxu0 %v215
  %465 = vmatprep.subr.bf16.mxu0 0
  %466 = vmatpush1.bf16.msra.mxu0 %v214
  %467 = vmatprep.subr.bf16.mxu0 0
  %468 = vmatpush2.bf16.msra.mxu0 0
  %469 = vmatprep.subr.bf16.mxu0 0
  %470 = vmatpush2.bf16.msra.mxu0 0
  %471 = vmatprep.subr.bf16.mxu0 0
  %472 = vmatpush2.bf16.msra.mxu0 0
  %473 = vmatprep.subr.bf16.mxu0 0
  %474 = vmatpush2.bf16.msra.mxu0 0
  %475 = vmatprep.subr.bf16.mxu0 0
  %476 = vmatpush2.bf16.msra.mxu0 0
  %477 = vmatprep.subr.bf16.mxu0 0
  %478 = vmatpush2.bf16.msra.mxu0 0
  %479 = vmatprep.subr.bf16.mxu0 0
  %480 = vmatpush2.bf16.msra.mxu0 0
  %481 = vmatprep.subr.bf16.mxu0 0
  %482 = vmatpush2.bf16.msra.mxu0 0
  %483 = vmatprep.mubr.bf16.mxu0 0
  %484 = vmatmul.mubr.bf16.gmra.mxu0 %v362
  %v485 = vpop.f32.mrf.mxu0
  %v486 = vadd.f32 0.0, %v485
  %v487 = vpop.f32.mrf.mxu0
  %v488 = vpop.f32.mrf.mxu0
  %v489 = vpop.f32.mrf.mxu0
  %490 = vdwg.mxu0
  %v491 = vadd.f32 %v175, %v486
  %v492 = vmul.f32 %v491, 0.5
  %v493 = vtanh.pop %v492
  %v494 = vmul.f32 %v493, 0.5
  %v495 = vadd.f32 %v494, 0.5
  %v496 = vtanh.pop %v491
  %v497 = vmul.f32 %v495, %v282
  %499 = vrot.lane.b32.xlu0 %v496, 64
  %v500 = vpop.permute.xlu0 %499
  %v502 = vmul.f32 %v495, %v500
  %504 = vrot.lane.b32.xlu0 %v502, 32
  %v505 = vpop.permute.xlu0 %504
  %v507 = vadd.f32 %v497, %v505
  %v508 = vtanh.pop %v507
  %510 = vrot.lane.b32.xlu0 %v508, 64
  %v511 = vpop.permute.xlu0 %510
  %v513 = vmul.f32 %v495, %v511
  %v514 = vpack.c.bf16 %v513, %v513
  %v515 = vpack.c.bf16 %v436, %v436
  %517 = vrot.lane.b32.xlu0 %v515, 32
  %v518 = vpop.permute.xlu0 %517
  %v520 = vsel %vm218, %v518, 0
  %522 = vmatprep.subr.bf16.mxu0 0
  %523 = vmatpush1.bf16.msra.mxu0 0
  %524 = vmatprep.subr.bf16.mxu0 0
  %525 = vmatpush1.bf16.msra.mxu0 0
  %526 = vmatprep.subr.bf16.mxu0 0
  %527 = vmatpush1.bf16.msra.mxu0 0
  %528 = vmatprep.subr.bf16.mxu0 0
  %529 = vmatpush1.bf16.msra.mxu0 0
  %530 = vmatprep.subr.bf16.mxu0 0
  %531 = vmatpush1.bf16.msra.mxu0 0
  %532 = vmatprep.subr.bf16.mxu0 0
  %533 = vmatpush1.bf16.msra.mxu0 0
  %534 = vmatprep.subr.bf16.mxu0 0
  %535 = vmatpush1.bf16.msra.mxu0 %v300
  %536 = vmatprep.subr.bf16.mxu0 0
  %537 = vmatpush1.bf16.msra.mxu0 %v299
  %538 = vmatprep.subr.bf16.mxu0 0
  %539 = vmatpush2.bf16.msra.mxu0 0
  %540 = vmatprep.subr.bf16.mxu0 0
  %541 = vmatpush2.bf16.msra.mxu0 0
  %542 = vmatprep.subr.bf16.mxu0 0
  %543 = vmatpush2.bf16.msra.mxu0 0
  %544 = vmatprep.subr.bf16.mxu0 0
  %545 = vmatpush2.bf16.msra.mxu0 0
  %546 = vmatprep.subr.bf16.mxu0 0
  %547 = vmatpush2.bf16.msra.mxu0 0
  %548 = vmatprep.subr.bf16.mxu0 0
  %549 = vmatpush2.bf16.msra.mxu0 0
  %550 = vmatprep.subr.bf16.mxu0 0
  %551 = vmatpush2.bf16.msra.mxu0 0
  %552 = vmatprep.subr.bf16.mxu0 0
  %553 = vmatpush2.bf16.msra.mxu0 0
  %554 = vmatprep.mubr.bf16.mxu0 0
  %555 = vmatmul.mubr.bf16.gmra.mxu0 %v520
  %v556 = vpop.f32.mrf.mxu0
  %v557 = vadd.f32 0.0, %v556
  %v558 = vpop.f32.mrf.mxu0
  %v559 = vpop.f32.mrf.mxu0
  %v560 = vpop.f32.mrf.mxu0
  %561 = vdwg.mxu0
  %563 = vrot.lane.b32.xlu0 %v514, 32
  %v564 = vpop.permute.xlu0 %563
  %v566 = vsel %vm218, %v564, 0
  %568 = vmatprep.subr.bf16.mxu0 0
  %569 = vmatpush1.bf16.msra.mxu0 0
  %570 = vmatprep.subr.bf16.mxu0 0
  %571 = vmatpush1.bf16.msra.mxu0 0
  %572 = vmatprep.subr.bf16.mxu0 0
  %573 = vmatpush1.bf16.msra.mxu0 0
  %574 = vmatprep.subr.bf16.mxu0 0
  %575 = vmatpush1.bf16.msra.mxu0 0
  %576 = vmatprep.subr.bf16.mxu0 0
  %577 = vmatpush1.bf16.msra.mxu0 0
  %578 = vmatprep.subr.bf16.mxu0 0
  %579 = vmatpush1.bf16.msra.mxu0 0
  %580 = vmatprep.subr.bf16.mxu0 0
  %581 = vmatpush1.bf16.msra.mxu0 %v358
  %582 = vmatprep.subr.bf16.mxu0 0
  %583 = vmatpush1.bf16.msra.mxu0 %v357
  %584 = vmatprep.subr.bf16.mxu0 0
  %585 = vmatpush2.bf16.msra.mxu0 0
  %586 = vmatprep.subr.bf16.mxu0 0
  %587 = vmatpush2.bf16.msra.mxu0 0
  %588 = vmatprep.subr.bf16.mxu0 0
  %589 = vmatpush2.bf16.msra.mxu0 0
  %590 = vmatprep.subr.bf16.mxu0 0
  %591 = vmatpush2.bf16.msra.mxu0 0
  %592 = vmatprep.subr.bf16.mxu0 0
  %593 = vmatpush2.bf16.msra.mxu0 0
  %594 = vmatprep.subr.bf16.mxu0 0
  %595 = vmatpush2.bf16.msra.mxu0 0
  %596 = vmatprep.subr.bf16.mxu0 0
  %597 = vmatpush2.bf16.msra.mxu0 0
  %598 = vmatprep.subr.bf16.mxu0 0
  %599 = vmatpush2.bf16.msra.mxu0 0
  %600 = vmatprep.mubr.bf16.mxu0 0
  %601 = vmatmul.mubr.bf16.gmra.mxu0 %v566
  %v602 = vpop.f32.mrf.mxu0
  %v603 = vadd.f32 %v557, %v602
  %v604 = vpop.f32.mrf.mxu0
  %v605 = vpop.f32.mrf.mxu0
  %v606 = vpop.f32.mrf.mxu0
  %607 = vdwg.mxu0
  %v608 = vadd.f32 %v603, %v408
  %v609 = vmul.f32 %v608, 0.5
  %v610 = vtanh.pop %v609
  %v611 = vmul.f32 %v610, 0.5
  %v612 = vadd.f32 %v611, 0.5
  %v613 = vtanh.pop %v608
  %v614 = vmul.f32 %v612, %v430
  %616 = vrot.lane.b32.xlu0 %v613, 64
  %v617 = vpop.permute.xlu0 %616
  %v619 = vmul.f32 %v612, %v617
  %621 = vrot.lane.b32.xlu0 %v619, 32
  %v622 = vpop.permute.xlu0 %621
  %v624 = vadd.f32 %v614, %v622
  %v625 = vtanh.pop %v624
  %627 = vrot.lane.b32.xlu0 %v625, 64
  %v628 = vpop.permute.xlu0 %627
  %v630 = vmul.f32 %v612, %v628
  %vm631 = vcmp.gt.s32.totalorder %v55, 1
  %v632 = vsel %vm631, 1, 0
  %v633 = vcvt.s32.f32 %v632
  %635 = vset.pattern.permute.xlu0 0
  %636 = vperm.xlu0 %635, %v633
  %v637 = vpop.permute.xlu0 %636
  %v639 = vmul.f32 %v630, %v637
  %641 = vrot.lane.b32.xlu0 %v639, 64
  %v642 = vpop.permute.xlu0 %641
  %vm644 = vcmask 523520
  %645 = vst.msk [vmem:[%s9] sm:$0xff] %vm644, %v642
  %646 = vmatprep.subr.bf16.mxu0 0
  %647 = vmatpush1.bf16.msra.mxu0 0
  %648 = vmatprep.subr.bf16.mxu0 0
  %649 = vmatpush1.bf16.msra.mxu0 0
  %650 = vmatprep.subr.bf16.mxu0 0
  %651 = vmatpush1.bf16.msra.mxu0 0
  %652 = vmatprep.subr.bf16.mxu0 0
  %653 = vmatpush1.bf16.msra.mxu0 0
  %654 = vmatprep.subr.bf16.mxu0 0
  %655 = vmatpush1.bf16.msra.mxu0 0
  %656 = vmatprep.subr.bf16.mxu0 0
  %657 = vmatpush1.bf16.msra.mxu0 0
  %658 = vmatprep.subr.bf16.mxu0 0
  %659 = vmatpush1.bf16.msra.mxu0 %v215
  %660 = vmatprep.subr.bf16.mxu0 0
  %661 = vmatpush1.bf16.msra.mxu0 %v214
  %662 = vmatprep.subr.bf16.mxu0 0
  %663 = vmatpush2.bf16.msra.mxu0 0
  %664 = vmatprep.subr.bf16.mxu0 0
  %665 = vmatpush2.bf16.msra.mxu0 0
  %666 = vmatprep.subr.bf16.mxu0 0
  %667 = vmatpush2.bf16.msra.mxu0 0
  %668 = vmatprep.subr.bf16.mxu0 0
  %669 = vmatpush2.bf16.msra.mxu0 0
  %670 = vmatprep.subr.bf16.mxu0 0
  %671 = vmatpush2.bf16.msra.mxu0 0
  %672 = vmatprep.subr.bf16.mxu0 0
  %673 = vmatpush2.bf16.msra.mxu0 0
  %674 = vmatprep.subr.bf16.mxu0 0
  %675 = vmatpush2.bf16.msra.mxu0 0
  %676 = vmatprep.subr.bf16.mxu0 0
  %677 = vmatpush2.bf16.msra.mxu0 0
  %678 = vmatprep.mubr.bf16.mxu0 0
  %679 = vmatmul.mubr.bf16.gmra.mxu0 %v566
  %v680 = vpop.f32.mrf.mxu0
  %v681 = vadd.f32 0.0, %v680
  %v682 = vpop.f32.mrf.mxu0
  %v683 = vpop.f32.mrf.mxu0
  %v684 = vpop.f32.mrf.mxu0
  %685 = vdwg.mxu0
  %v686 = vadd.f32 %v180, %v681
  %v687 = vmul.f32 %v686, 0.5
  %v688 = vtanh.pop %v687
  %v689 = vmul.f32 %v688, 0.5
  %v690 = vadd.f32 %v689, 0.5
  %v691 = vtanh.pop %v686
  %v692 = vmul.f32 %v690, %v507
  %694 = vrot.lane.b32.xlu0 %v691, 64
  %v695 = vpop.permute.xlu0 %694
  %v697 = vmul.f32 %v690, %v695
  %699 = vrot.lane.b32.xlu0 %v697, 32
  %v700 = vpop.permute.xlu0 %699
  %v702 = vadd.f32 %v692, %v700
  %v703 = vtanh.pop %v702
  %705 = vrot.lane.b32.xlu0 %v703, 64
  %v706 = vpop.permute.xlu0 %705
  %v708 = vmul.f32 %v690, %v706
  %v709 = vpack.c.bf16 %v708, %v708
  %v710 = vpack.c.bf16 %v630, %v630
  %712 = vrot.lane.b32.xlu0 %v710, 32
  %v713 = vpop.permute.xlu0 %712
  %v715 = vsel %vm218, %v713, 0
  %717 = vmatprep.subr.bf16.mxu0 0
  %718 = vmatpush1.bf16.msra.mxu0 0
  %719 = vmatprep.subr.bf16.mxu0 0
  %720 = vmatpush1.bf16.msra.mxu0 0
  %721 = vmatprep.subr.bf16.mxu0 0
  %722 = vmatpush1.bf16.msra.mxu0 0
  %723 = vmatprep.subr.bf16.mxu0 0
  %724 = vmatpush1.bf16.msra.mxu0 0
  %725 = vmatprep.subr.bf16.mxu0 0
  %726 = vmatpush1.bf16.msra.mxu0 0
  %727 = vmatprep.subr.bf16.mxu0 0
  %728 = vmatpush1.bf16.msra.mxu0 0
  %729 = vmatprep.subr.bf16.mxu0 0
  %730 = vmatpush1.bf16.msra.mxu0 %v300
  %731 = vmatprep.subr.bf16.mxu0 0
  %732 = vmatpush1.bf16.msra.mxu0 %v299
  %733 = vmatprep.subr.bf16.mxu0 0
  %734 = vmatpush2.bf16.msra.mxu0 0
  %735 = vmatprep.subr.bf16.mxu0 0
  %736 = vmatpush2.bf16.msra.mxu0 0
  %737 = vmatprep.subr.bf16.mxu0 0
  %738 = vmatpush2.bf16.msra.mxu0 0
  %739 = vmatprep.subr.bf16.mxu0 0
  %740 = vmatpush2.bf16.msra.mxu0 0
  %741 = vmatprep.subr.bf16.mxu0 0
  %742 = vmatpush2.bf16.msra.mxu0 0
  %743 = vmatprep.subr.bf16.mxu0 0
  %744 = vmatpush2.bf16.msra.mxu0 0
  %745 = vmatprep.subr.bf16.mxu0 0
  %746 = vmatpush2.bf16.msra.mxu0 0
  %747 = vmatprep.subr.bf16.mxu0 0
  %748 = vmatpush2.bf16.msra.mxu0 0
  %749 = vmatprep.mubr.bf16.mxu0 0
  %750 = vmatmul.mubr.bf16.gmra.mxu0 %v715
  %v751 = vpop.f32.mrf.mxu0
  %v752 = vadd.f32 0.0, %v751
  %v753 = vpop.f32.mrf.mxu0
  %v754 = vpop.f32.mrf.mxu0
  %v755 = vpop.f32.mrf.mxu0
  %756 = vdwg.mxu0
  %758 = vrot.lane.b32.xlu0 %v709, 32
  %v759 = vpop.permute.xlu0 %758
  %v761 = vsel %vm218, %v759, 0
  %763 = vmatprep.subr.bf16.mxu0 0
  %764 = vmatpush1.bf16.msra.mxu0 0
  %765 = vmatprep.subr.bf16.mxu0 0
  %766 = vmatpush1.bf16.msra.mxu0 0
  %767 = vmatprep.subr.bf16.mxu0 0
  %768 = vmatpush1.bf16.msra.mxu0 0
  %769 = vmatprep.subr.bf16.mxu0 0
  %770 = vmatpush1.bf16.msra.mxu0 0
  %771 = vmatprep.subr.bf16.mxu0 0
  %772 = vmatpush1.bf16.msra.mxu0 0
  %773 = vmatprep.subr.bf16.mxu0 0
  %774 = vmatpush1.bf16.msra.mxu0 0
  %775 = vmatprep.subr.bf16.mxu0 0
  %776 = vmatpush1.bf16.msra.mxu0 %v358
  %777 = vmatprep.subr.bf16.mxu0 0
  %778 = vmatpush1.bf16.msra.mxu0 %v357
  %779 = vmatprep.subr.bf16.mxu0 0
  %780 = vmatpush2.bf16.msra.mxu0 0
  %781 = vmatprep.subr.bf16.mxu0 0
  %782 = vmatpush2.bf16.msra.mxu0 0
  %783 = vmatprep.subr.bf16.mxu0 0
  %784 = vmatpush2.bf16.msra.mxu0 0
  %785 = vmatprep.subr.bf16.mxu0 0
  %786 = vmatpush2.bf16.msra.mxu0 0
  %787 = vmatprep.subr.bf16.mxu0 0
  %788 = vmatpush2.bf16.msra.mxu0 0
  %789 = vmatprep.subr.bf16.mxu0 0
  %790 = vmatpush2.bf16.msra.mxu0 0
  %791 = vmatprep.subr.bf16.mxu0 0
  %792 = vmatpush2.bf16.msra.mxu0 0
  %793 = vmatprep.subr.bf16.mxu0 0
  %794 = vmatpush2.bf16.msra.mxu0 0
  %795 = vmatprep.mubr.bf16.mxu0 0
  %796 = vmatmul.mubr.bf16.gmra.mxu0 %v761
  %v797 = vpop.f32.mrf.mxu0
  %v798 = vadd.f32 %v752, %v797
  %v799 = vpop.f32.mrf.mxu0
  %v800 = vpop.f32.mrf.mxu0
  %v801 = vpop.f32.mrf.mxu0
  %802 = vdwg.mxu0
  %v803 = vadd.f32 %v798, %v408
  %v804 = vmul.f32 %v803, 0.5
  %v805 = vtanh.pop %v804
  %v806 = vmul.f32 %v805, 0.5
  %v807 = vadd.f32 %v806, 0.5
  %v808 = vtanh.pop %v803
  %v809 = vmul.f32 %v807, %v624
  %811 = vrot.lane.b32.xlu0 %v808, 64
  %v812 = vpop.permute.xlu0 %811
  %v814 = vmul.f32 %v807, %v812
  %816 = vrot.lane.b32.xlu0 %v814, 32
  %v817 = vpop.permute.xlu0 %816
  %v819 = vadd.f32 %v809, %v817
  %v820 = vtanh.pop %v819
  %822 = vrot.lane.b32.xlu0 %v820, 64
  %v823 = vpop.permute.xlu0 %822
  %v825 = vmul.f32 %v807, %v823
  %vm826 = vcmp.gt.s32.totalorder %v55, 2
  %v827 = vsel %vm826, 1, 0
  %v828 = vcvt.s32.f32 %v827
  %830 = vset.pattern.permute.xlu0 0
  %831 = vperm.xlu0 %830, %v828
  %v832 = vpop.permute.xlu0 %831
  %v834 = vmul.f32 %v825, %v832
  %836 = vrot.lane.b32.xlu0 %v834, 96
  %v837 = vpop.permute.xlu0 %836
  %vm839 = vcmask 785920
  %840 = vst.msk [vmem:[%s9] sm:$0xff] %vm839, %v837
  %841 = vmatprep.subr.bf16.mxu0 0
  %842 = vmatpush1.bf16.msra.mxu0 0
  %843 = vmatprep.subr.bf16.mxu0 0
  %844 = vmatpush1.bf16.msra.mxu0 0
  %845 = vmatprep.subr.bf16.mxu0 0
  %846 = vmatpush1.bf16.msra.mxu0 0
  %847 = vmatprep.subr.bf16.mxu0 0
  %848 = vmatpush1.bf16.msra.mxu0 0
  %849 = vmatprep.subr.bf16.mxu0 0
  %850 = vmatpush1.bf16.msra.mxu0 0
  %851 = vmatprep.subr.bf16.mxu0 0
  %852 = vmatpush1.bf16.msra.mxu0 0
  %853 = vmatprep.subr.bf16.mxu0 0
  %854 = vmatpush1.bf16.msra.mxu0 %v215
  %855 = vmatprep.subr.bf16.mxu0 0
  %856 = vmatpush1.bf16.msra.mxu0 %v214
  %857 = vmatprep.subr.bf16.mxu0 0
  %858 = vmatpush2.bf16.msra.mxu0 0
  %859 = vmatprep.subr.bf16.mxu0 0
  %860 = vmatpush2.bf16.msra.mxu0 0
  %861 = vmatprep.subr.bf16.mxu0 0
  %862 = vmatpush2.bf16.msra.mxu0 0
  %863 = vmatprep.subr.bf16.mxu0 0
  %864 = vmatpush2.bf16.msra.mxu0 0
  %865 = vmatprep.subr.bf16.mxu0 0
  %866 = vmatpush2.bf16.msra.mxu0 0
  %867 = vmatprep.subr.bf16.mxu0 0
  %868 = vmatpush2.bf16.msra.mxu0 0
  %869 = vmatprep.subr.bf16.mxu0 0
  %870 = vmatpush2.bf16.msra.mxu0 0
  %871 = vmatprep.subr.bf16.mxu0 0
  %872 = vmatpush2.bf16.msra.mxu0 0
  %873 = vmatprep.mubr.bf16.mxu0 0
  %874 = vmatmul.mubr.bf16.gmra.mxu0 %v761
  %v875 = vpop.f32.mrf.mxu0
  %v876 = vadd.f32 0.0, %v875
  %v877 = vpop.f32.mrf.mxu0
  %v878 = vpop.f32.mrf.mxu0
  %v879 = vpop.f32.mrf.mxu0
  %880 = vdwg.mxu0
  %v881 = vadd.f32 %v183, %v876
  %v882 = vmul.f32 %v881, 0.5
  %v883 = vtanh.pop %v882
  %v884 = vmul.f32 %v883, 0.5
  %v885 = vadd.f32 %v884, 0.5
  %v886 = vtanh.pop %v881
  %v887 = vmul.f32 %v885, %v702
  %889 = vrot.lane.b32.xlu0 %v886, 64
  %v890 = vpop.permute.xlu0 %889
  %v892 = vmul.f32 %v885, %v890
  %894 = vrot.lane.b32.xlu0 %v892, 32
  %v895 = vpop.permute.xlu0 %894
  %v897 = vadd.f32 %v887, %v895
  %v898 = vtanh.pop %v897
  %900 = vrot.lane.b32.xlu0 %v898, 64
  %v901 = vpop.permute.xlu0 %900
  %v903 = vmul.f32 %v885, %v901
  %v904 = vpack.c.bf16 %v903, %v903
  %v905 = vpack.c.bf16 %v825, %v825
  %907 = vrot.lane.b32.xlu0 %v905, 32
  %v908 = vpop.permute.xlu0 %907
  %v910 = vsel %vm218, %v908, 0
  %912 = vmatprep.subr.bf16.mxu0 0
  %913 = vmatpush1.bf16.msra.mxu0 0
  %914 = vmatprep.subr.bf16.mxu0 0
  %915 = vmatpush1.bf16.msra.mxu0 0
  %916 = vmatprep.subr.bf16.mxu0 0
  %917 = vmatpush1.bf16.msra.mxu0 0
  %918 = vmatprep.subr.bf16.mxu0 0
  %919 = vmatpush1.bf16.msra.mxu0 0
  %920 = vmatprep.subr.bf16.mxu0 0
  %921 = vmatpush1.bf16.msra.mxu0 0
  %922 = vmatprep.subr.bf16.mxu0 0
  %923 = vmatpush1.bf16.msra.mxu0 0
  %924 = vmatprep.subr.bf16.mxu0 0
  %925 = vmatpush1.bf16.msra.mxu0 %v300
  %926 = vmatprep.subr.bf16.mxu0 0
  %927 = vmatpush1.bf16.msra.mxu0 %v299
  %928 = vmatprep.subr.bf16.mxu0 0
  %929 = vmatpush2.bf16.msra.mxu0 0
  %930 = vmatprep.subr.bf16.mxu0 0
  %931 = vmatpush2.bf16.msra.mxu0 0
  %932 = vmatprep.subr.bf16.mxu0 0
  %933 = vmatpush2.bf16.msra.mxu0 0
  %934 = vmatprep.subr.bf16.mxu0 0
  %935 = vmatpush2.bf16.msra.mxu0 0
  %936 = vmatprep.subr.bf16.mxu0 0
  %937 = vmatpush2.bf16.msra.mxu0 0
  %938 = vmatprep.subr.bf16.mxu0 0
  %939 = vmatpush2.bf16.msra.mxu0 0
  %940 = vmatprep.subr.bf16.mxu0 0
  %941 = vmatpush2.bf16.msra.mxu0 0
  %942 = vmatprep.subr.bf16.mxu0 0
  %943 = vmatpush2.bf16.msra.mxu0 0
  %944 = vmatprep.mubr.bf16.mxu0 0
  %945 = vmatmul.mubr.bf16.gmra.mxu0 %v910
  %v946 = vpop.f32.mrf.mxu0
  %v947 = vadd.f32 0.0, %v946
  %v948 = vpop.f32.mrf.mxu0
  %v949 = vpop.f32.mrf.mxu0
  %v950 = vpop.f32.mrf.mxu0
  %951 = vdwg.mxu0
  %953 = vrot.lane.b32.xlu0 %v904, 32
  %v954 = vpop.permute.xlu0 %953
  %v956 = vsel %vm218, %v954, 0
  %958 = vmatprep.subr.bf16.mxu0 0
  %959 = vmatpush1.bf16.msra.mxu0 0
  %960 = vmatprep.subr.bf16.mxu0 0
  %961 = vmatpush1.bf16.msra.mxu0 0
  %962 = vmatprep.subr.bf16.mxu0 0
  %963 = vmatpush1.bf16.msra.mxu0 0
  %964 = vmatprep.subr.bf16.mxu0 0
  %965 = vmatpush1.bf16.msra.mxu0 0
  %966 = vmatprep.subr.bf16.mxu0 0
  %967 = vmatpush1.bf16.msra.mxu0 0
  %968 = vmatprep.subr.bf16.mxu0 0
  %969 = vmatpush1.bf16.msra.mxu0 0
  %970 = vmatprep.subr.bf16.mxu0 0
  %971 = vmatpush1.bf16.msra.mxu0 %v358
  %972 = vmatprep.subr.bf16.mxu0 0
  %973 = vmatpush1.bf16.msra.mxu0 %v357
  %974 = vmatprep.subr.bf16.mxu0 0
  %975 = vmatpush2.bf16.msra.mxu0 0
  %976 = vmatprep.subr.bf16.mxu0 0
  %977 = vmatpush2.bf16.msra.mxu0 0
  %978 = vmatprep.subr.bf16.mxu0 0
  %979 = vmatpush2.bf16.msra.mxu0 0
  %980 = vmatprep.subr.bf16.mxu0 0
  %981 = vmatpush2.bf16.msra.mxu0 0
  %982 = vmatprep.subr.bf16.mxu0 0
  %983 = vmatpush2.bf16.msra.mxu0 0
  %984 = vmatprep.subr.bf16.mxu0 0
  %985 = vmatpush2.bf16.msra.mxu0 0
  %986 = vmatprep.subr.bf16.mxu0 0
  %987 = vmatpush2.bf16.msra.mxu0 0
  %988 = vmatprep.subr.bf16.mxu0 0
  %989 = vmatpush2.bf16.msra.mxu0 0
  %990 = vmatprep.mubr.bf16.mxu0 0
  %991 = vmatmul.mubr.bf16.gmra.mxu0 %v956
  %v992 = vpop.f32.mrf.mxu0
  %v993 = vadd.f32 %v947, %v992
  %v994 = vpop.f32.mrf.mxu0
  %v995 = vpop.f32.mrf.mxu0
  %v996 = vpop.f32.mrf.mxu0
  %997 = vdwg.mxu0
  %v998 = vadd.f32 %v993, %v408
  %v999 = vmul.f32 %v998, 0.5
  %v1000 = vtanh.pop %v999
  %v1001 = vmul.f32 %v1000, 0.5
  %v1002 = vadd.f32 %v1001, 0.5
  %v1003 = vtanh.pop %v998
  %v1004 = vmul.f32 %v1002, %v819
  %1006 = vrot.lane.b32.xlu0 %v1003, 64
  %v1007 = vpop.permute.xlu0 %1006
  %v1009 = vmul.f32 %v1002, %v1007
  %1011 = vrot.lane.b32.xlu0 %v1009, 32
  %v1012 = vpop.permute.xlu0 %1011
  %v1014 = vadd.f32 %v1004, %v1012
  %v1015 = vtanh.pop %v1014
  %1017 = vrot.lane.b32.xlu0 %v1015, 64
  %v1018 = vpop.permute.xlu0 %1017
  %v1020 = vmul.f32 %v1002, %v1018
  %vm1021 = vcmp.gt.s32.totalorder %v55, 3
  %v1022 = vsel %vm1021, 1, 0
  %v1023 = vcvt.s32.f32 %v1022
  %1025 = vset.pattern.permute.xlu0 0
  %1026 = vperm.xlu0 %1025, %v1023
  %v1027 = vpop.permute.xlu0 %1026
  %v1029 = vmul.f32 %v1020, %v1027
  %vm1030 = vcmask 1048320
  %1031 = vst.msk [vmem:[%s9] sm:$0xff] %vm1030, %v1029
  %1032 = vmatprep.subr.bf16.mxu0 0
  %1033 = vmatpush1.bf16.msra.mxu0 0
  %1034 = vmatprep.subr.bf16.mxu0 0
  %1035 = vmatpush1.bf16.msra.mxu0 0
  %1036 = vmatprep.subr.bf16.mxu0 0
  %1037 = vmatpush1.bf16.msra.mxu0 0
  %1038 = vmatprep.subr.bf16.mxu0 0
  %1039 = vmatpush1.bf16.msra.mxu0 0
  %1040 = vmatprep.subr.bf16.mxu0 0
  %1041 = vmatpush1.bf16.msra.mxu0 0
  %1042 = vmatprep.subr.bf16.mxu0 0
  %1043 = vmatpush1.bf16.msra.mxu0 0
  %1044 = vmatprep.subr.bf16.mxu0 0
  %1045 = vmatpush1.bf16.msra.mxu0 %v215
  %1046 = vmatprep.subr.bf16.mxu0 0
  %1047 = vmatpush1.bf16.msra.mxu0 %v214
  %1048 = vmatprep.subr.bf16.mxu0 0
  %1049 = vmatpush2.bf16.msra.mxu0 0
  %1050 = vmatprep.subr.bf16.mxu0 0
  %1051 = vmatpush2.bf16.msra.mxu0 0
  %1052 = vmatprep.subr.bf16.mxu0 0
  %1053 = vmatpush2.bf16.msra.mxu0 0
  %1054 = vmatprep.subr.bf16.mxu0 0
  %1055 = vmatpush2.bf16.msra.mxu0 0
  %1056 = vmatprep.subr.bf16.mxu0 0
  %1057 = vmatpush2.bf16.msra.mxu0 0
  %1058 = vmatprep.subr.bf16.mxu0 0
  %1059 = vmatpush2.bf16.msra.mxu0 0
  %1060 = vmatprep.subr.bf16.mxu0 0
  %1061 = vmatpush2.bf16.msra.mxu0 0
  %1062 = vmatprep.subr.bf16.mxu0 0
  %1063 = vmatpush2.bf16.msra.mxu0 0
  %1064 = vmatprep.mubr.bf16.mxu0 0
  %1065 = vmatmul.mubr.bf16.gmra.mxu0 %v956
  %v1066 = vpop.f32.mrf.mxu0
  %v1067 = vadd.f32 0.0, %v1066
  %v1068 = vpop.f32.mrf.mxu0
  %v1069 = vpop.f32.mrf.mxu0
  %v1070 = vpop.f32.mrf.mxu0
  %1071 = vdwg.mxu0
  %v1072 = vadd.f32 %v188, %v1067
  %v1073 = vmul.f32 %v1072, 0.5
  %v1074 = vtanh.pop %v1073
  %v1075 = vmul.f32 %v1074, 0.5
  %v1076 = vadd.f32 %v1075, 0.5
  %v1077 = vtanh.pop %v1072
  %v1078 = vmul.f32 %v1076, %v897
  %1080 = vrot.lane.b32.xlu0 %v1077, 64
  %v1081 = vpop.permute.xlu0 %1080
  %v1083 = vmul.f32 %v1076, %v1081
  %1085 = vrot.lane.b32.xlu0 %v1083, 32
  %v1086 = vpop.permute.xlu0 %1085
  %v1088 = vadd.f32 %v1078, %v1086
  %v1089 = vtanh.pop %v1088
  %1091 = vrot.lane.b32.xlu0 %v1089, 64
  %v1092 = vpop.permute.xlu0 %1091
  %v1094 = vmul.f32 %v1076, %v1092
  %v1095 = vpack.c.bf16 %v1094, %v1094
  %v1096 = vpack.c.bf16 %v1020, %v1020
  %1098 = vrot.lane.b32.xlu0 %v1096, 32
  %v1099 = vpop.permute.xlu0 %1098
  %v1101 = vsel %vm218, %v1099, 0
  %1103 = vmatprep.subr.bf16.mxu0 0
  %1104 = vmatpush1.bf16.msra.mxu0 0
  %1105 = vmatprep.subr.bf16.mxu0 0
  %1106 = vmatpush1.bf16.msra.mxu0 0
  %1107 = vmatprep.subr.bf16.mxu0 0
  %1108 = vmatpush1.bf16.msra.mxu0 0
  %1109 = vmatprep.subr.bf16.mxu0 0
  %1110 = vmatpush1.bf16.msra.mxu0 0
  %1111 = vmatprep.subr.bf16.mxu0 0
  %1112 = vmatpush1.bf16.msra.mxu0 0
  %1113 = vmatprep.subr.bf16.mxu0 0
  %1114 = vmatpush1.bf16.msra.mxu0 0
  %1115 = vmatprep.subr.bf16.mxu0 0
  %1116 = vmatpush1.bf16.msra.mxu0 %v300
  %1117 = vmatprep.subr.bf16.mxu0 0
  %1118 = vmatpush1.bf16.msra.mxu0 %v299
  %1119 = vmatprep.subr.bf16.mxu0 0
  %1120 = vmatpush2.bf16.msra.mxu0 0
  %1121 = vmatprep.subr.bf16.mxu0 0
  %1122 = vmatpush2.bf16.msra.mxu0 0
  %1123 = vmatprep.subr.bf16.mxu0 0
  %1124 = vmatpush2.bf16.msra.mxu0 0
  %1125 = vmatprep.subr.bf16.mxu0 0
  %1126 = vmatpush2.bf16.msra.mxu0 0
  %1127 = vmatprep.subr.bf16.mxu0 0
  %1128 = vmatpush2.bf16.msra.mxu0 0
  %1129 = vmatprep.subr.bf16.mxu0 0
  %1130 = vmatpush2.bf16.msra.mxu0 0
  %1131 = vmatprep.subr.bf16.mxu0 0
  %1132 = vmatpush2.bf16.msra.mxu0 0
  %1133 = vmatprep.subr.bf16.mxu0 0
  %1134 = vmatpush2.bf16.msra.mxu0 0
  %1135 = vmatprep.mubr.bf16.mxu0 0
  %1136 = vmatmul.mubr.bf16.gmra.mxu0 %v1101
  %v1137 = vpop.f32.mrf.mxu0
  %v1138 = vadd.f32 0.0, %v1137
  %v1139 = vpop.f32.mrf.mxu0
  %v1140 = vpop.f32.mrf.mxu0
  %v1141 = vpop.f32.mrf.mxu0
  %1142 = vdwg.mxu0
  %1144 = vrot.lane.b32.xlu0 %v1095, 32
  %v1145 = vpop.permute.xlu0 %1144
  %v1147 = vsel %vm218, %v1145, 0
  %1149 = vmatprep.subr.bf16.mxu0 0
  %1150 = vmatpush1.bf16.msra.mxu0 0
  %1151 = vmatprep.subr.bf16.mxu0 0
  %1152 = vmatpush1.bf16.msra.mxu0 0
  %1153 = vmatprep.subr.bf16.mxu0 0
  %1154 = vmatpush1.bf16.msra.mxu0 0
  %1155 = vmatprep.subr.bf16.mxu0 0
  %1156 = vmatpush1.bf16.msra.mxu0 0
  %1157 = vmatprep.subr.bf16.mxu0 0
  %1158 = vmatpush1.bf16.msra.mxu0 0
  %1159 = vmatprep.subr.bf16.mxu0 0
  %1160 = vmatpush1.bf16.msra.mxu0 0
  %1161 = vmatprep.subr.bf16.mxu0 0
  %1162 = vmatpush1.bf16.msra.mxu0 %v358
  %1163 = vmatprep.subr.bf16.mxu0 0
  %1164 = vmatpush1.bf16.msra.mxu0 %v357
  %1165 = vmatprep.subr.bf16.mxu0 0
  %1166 = vmatpush2.bf16.msra.mxu0 0
  %1167 = vmatprep.subr.bf16.mxu0 0
  %1168 = vmatpush2.bf16.msra.mxu0 0
  %1169 = vmatprep.subr.bf16.mxu0 0
  %1170 = vmatpush2.bf16.msra.mxu0 0
  %1171 = vmatprep.subr.bf16.mxu0 0
  %1172 = vmatpush2.bf16.msra.mxu0 0
  %1173 = vmatprep.subr.bf16.mxu0 0
  %1174 = vmatpush2.bf16.msra.mxu0 0
  %1175 = vmatprep.subr.bf16.mxu0 0
  %1176 = vmatpush2.bf16.msra.mxu0 0
  %1177 = vmatprep.subr.bf16.mxu0 0
  %1178 = vmatpush2.bf16.msra.mxu0 0
  %1179 = vmatprep.subr.bf16.mxu0 0
  %1180 = vmatpush2.bf16.msra.mxu0 0
  %1181 = vmatprep.mubr.bf16.mxu0 0
  %1182 = vmatmul.mubr.bf16.gmra.mxu0 %v1147
  %v1183 = vpop.f32.mrf.mxu0
  %v1184 = vadd.f32 %v1138, %v1183
  %v1185 = vpop.f32.mrf.mxu0
  %v1186 = vpop.f32.mrf.mxu0
  %v1187 = vpop.f32.mrf.mxu0
  %1188 = vdwg.mxu0
  %v1189 = vadd.f32 %v1184, %v408
  %v1190 = vmul.f32 %v1189, 0.5
  %v1191 = vtanh.pop %v1190
  %v1192 = vmul.f32 %v1191, 0.5
  %v1193 = vadd.f32 %v1192, 0.5
  %v1194 = vtanh.pop %v1189
  %v1195 = vmul.f32 %v1193, %v1014
  %1197 = vrot.lane.b32.xlu0 %v1194, 64
  %v1198 = vpop.permute.xlu0 %1197
  %v1200 = vmul.f32 %v1193, %v1198
  %1202 = vrot.lane.b32.xlu0 %v1200, 32
  %v1203 = vpop.permute.xlu0 %1202
  %v1205 = vadd.f32 %v1195, %v1203
  %v1206 = vtanh.pop %v1205
  %1208 = vrot.lane.b32.xlu0 %v1206, 64
  %v1209 = vpop.permute.xlu0 %1208
  %v1211 = vmul.f32 %v1193, %v1209
  %vm1212 = vcmp.gt.s32.totalorder %v55, 4
  %v1213 = vsel %vm1212, 1, 0
  %v1214 = vcvt.s32.f32 %v1213
  %1216 = vset.pattern.permute.xlu0 0
  %1217 = vperm.xlu0 %1216, %v1214
  %v1218 = vpop.permute.xlu0 %1217
  %v1220 = vmul.f32 %v1211, %v1218
  %1222 = vrot.lane.b32.xlu0 %v1220, 32
  %v1223 = vpop.permute.xlu0 %1222
  %1225 = vst.msk [vmem:[%s9 + $0x8] sm:$0xff] %vm218, %v1223
  %1226 = vmatprep.subr.bf16.mxu0 0
  %1227 = vmatpush1.bf16.msra.mxu0 0
  %1228 = vmatprep.subr.bf16.mxu0 0
  %1229 = vmatpush1.bf16.msra.mxu0 0
  %1230 = vmatprep.subr.bf16.mxu0 0
  %1231 = vmatpush1.bf16.msra.mxu0 0
  %1232 = vmatprep.subr.bf16.mxu0 0
  %1233 = vmatpush1.bf16.msra.mxu0 0
  %1234 = vmatprep.subr.bf16.mxu0 0
  %1235 = vmatpush1.bf16.msra.mxu0 0
  %1236 = vmatprep.subr.bf16.mxu0 0
  %1237 = vmatpush1.bf16.msra.mxu0 0
  %1238 = vmatprep.subr.bf16.mxu0 0
  %1239 = vmatpush1.bf16.msra.mxu0 %v215
  %1240 = vmatprep.subr.bf16.mxu0 0
  %1241 = vmatpush1.bf16.msra.mxu0 %v214
  %1242 = vmatprep.subr.bf16.mxu0 0
  %1243 = vmatpush2.bf16.msra.mxu0 0
  %1244 = vmatprep.subr.bf16.mxu0 0
  %1245 = vmatpush2.bf16.msra.mxu0 0
  %1246 = vmatprep.subr.bf16.mxu0 0
  %1247 = vmatpush2.bf16.msra.mxu0 0
  %1248 = vmatprep.subr.bf16.mxu0 0
  %1249 = vmatpush2.bf16.msra.mxu0 0
  %1250 = vmatprep.subr.bf16.mxu0 0
  %1251 = vmatpush2.bf16.msra.mxu0 0
  %1252 = vmatprep.subr.bf16.mxu0 0
  %1253 = vmatpush2.bf16.msra.mxu0 0
  %1254 = vmatprep.subr.bf16.mxu0 0
  %1255 = vmatpush2.bf16.msra.mxu0 0
  %1256 = vmatprep.subr.bf16.mxu0 0
  %1257 = vmatpush2.bf16.msra.mxu0 0
  %1258 = vmatprep.mubr.bf16.mxu0 0
  %1259 = vmatmul.mubr.bf16.gmra.mxu0 %v1147
  %v1260 = vpop.f32.mrf.mxu0
  %v1261 = vadd.f32 0.0, %v1260
  %v1262 = vpop.f32.mrf.mxu0
  %v1263 = vpop.f32.mrf.mxu0
  %v1264 = vpop.f32.mrf.mxu0
  %1265 = vdwg.mxu0
  %v1266 = vadd.f32 %v191, %v1261
  %v1267 = vmul.f32 %v1266, 0.5
  %v1268 = vtanh.pop %v1267
  %v1269 = vmul.f32 %v1268, 0.5
  %v1270 = vadd.f32 %v1269, 0.5
  %v1271 = vtanh.pop %v1266
  %v1272 = vmul.f32 %v1270, %v1088
  %1274 = vrot.lane.b32.xlu0 %v1271, 64
  %v1275 = vpop.permute.xlu0 %1274
  %v1277 = vmul.f32 %v1270, %v1275
  %1279 = vrot.lane.b32.xlu0 %v1277, 32
  %v1280 = vpop.permute.xlu0 %1279
  %v1282 = vadd.f32 %v1272, %v1280
  %v1283 = vtanh.pop %v1282
  %1285 = vrot.lane.b32.xlu0 %v1283, 64
  %v1286 = vpop.permute.xlu0 %1285
  %v1288 = vmul.f32 %v1270, %v1286
  %v1289 = vpack.c.bf16 %v1288, %v1288
  %v1290 = vpack.c.bf16 %v1211, %v1211
  %1292 = vrot.lane.b32.xlu0 %v1290, 32
  %v1293 = vpop.permute.xlu0 %1292
  %v1295 = vsel %vm218, %v1293, 0
  %1297 = vmatprep.subr.bf16.mxu0 0
  %1298 = vmatpush1.bf16.msra.mxu0 0
  %1299 = vmatprep.subr.bf16.mxu0 0
  %1300 = vmatpush1.bf16.msra.mxu0 0
  %1301 = vmatprep.subr.bf16.mxu0 0
  %1302 = vmatpush1.bf16.msra.mxu0 0
  %1303 = vmatprep.subr.bf16.mxu0 0
  %1304 = vmatpush1.bf16.msra.mxu0 0
  %1305 = vmatprep.subr.bf16.mxu0 0
  %1306 = vmatpush1.bf16.msra.mxu0 0
  %1307 = vmatprep.subr.bf16.mxu0 0
  %1308 = vmatpush1.bf16.msra.mxu0 0
  %1309 = vmatprep.subr.bf16.mxu0 0
  %1310 = vmatpush1.bf16.msra.mxu0 %v300
  %1311 = vmatprep.subr.bf16.mxu0 0
  %1312 = vmatpush1.bf16.msra.mxu0 %v299
  %1313 = vmatprep.subr.bf16.mxu0 0
  %1314 = vmatpush2.bf16.msra.mxu0 0
  %1315 = vmatprep.subr.bf16.mxu0 0
  %1316 = vmatpush2.bf16.msra.mxu0 0
  %1317 = vmatprep.subr.bf16.mxu0 0
  %1318 = vmatpush2.bf16.msra.mxu0 0
  %1319 = vmatprep.subr.bf16.mxu0 0
  %1320 = vmatpush2.bf16.msra.mxu0 0
  %1321 = vmatprep.subr.bf16.mxu0 0
  %1322 = vmatpush2.bf16.msra.mxu0 0
  %1323 = vmatprep.subr.bf16.mxu0 0
  %1324 = vmatpush2.bf16.msra.mxu0 0
  %1325 = vmatprep.subr.bf16.mxu0 0
  %1326 = vmatpush2.bf16.msra.mxu0 0
  %1327 = vmatprep.subr.bf16.mxu0 0
  %1328 = vmatpush2.bf16.msra.mxu0 0
  %1329 = vmatprep.mubr.bf16.mxu0 0
  %1330 = vmatmul.mubr.bf16.gmra.mxu0 %v1295
  %v1331 = vpop.f32.mrf.mxu0
  %v1332 = vadd.f32 0.0, %v1331
  %v1333 = vpop.f32.mrf.mxu0
  %v1334 = vpop.f32.mrf.mxu0
  %v1335 = vpop.f32.mrf.mxu0
  %1336 = vdwg.mxu0
  %1338 = vrot.lane.b32.xlu0 %v1289, 32
  %v1339 = vpop.permute.xlu0 %1338
  %v1341 = vsel %vm218, %v1339, 0
  %1343 = vmatprep.subr.bf16.mxu0 0
  %1344 = vmatpush1.bf16.msra.mxu0 0
  %1345 = vmatprep.subr.bf16.mxu0 0
  %1346 = vmatpush1.bf16.msra.mxu0 0
  %1347 = vmatprep.subr.bf16.mxu0 0
  %1348 = vmatpush1.bf16.msra.mxu0 0
  %1349 = vmatprep.subr.bf16.mxu0 0
  %1350 = vmatpush1.bf16.msra.mxu0 0
  %1351 = vmatprep.subr.bf16.mxu0 0
  %1352 = vmatpush1.bf16.msra.mxu0 0
  %1353 = vmatprep.subr.bf16.mxu0 0
  %1354 = vmatpush1.bf16.msra.mxu0 0
  %1355 = vmatprep.subr.bf16.mxu0 0
  %1356 = vmatpush1.bf16.msra.mxu0 %v358
  %1357 = vmatprep.subr.bf16.mxu0 0
  %1358 = vmatpush1.bf16.msra.mxu0 %v357
  %1359 = vmatprep.subr.bf16.mxu0 0
  %1360 = vmatpush2.bf16.msra.mxu0 0
  %1361 = vmatprep.subr.bf16.mxu0 0
  %1362 = vmatpush2.bf16.msra.mxu0 0
  %1363 = vmatprep.subr.bf16.mxu0 0
  %1364 = vmatpush2.bf16.msra.mxu0 0
  %1365 = vmatprep.subr.bf16.mxu0 0
  %1366 = vmatpush2.bf16.msra.mxu0 0
  %1367 = vmatprep.subr.bf16.mxu0 0
  %1368 = vmatpush2.bf16.msra.mxu0 0
  %1369 = vmatprep.subr.bf16.mxu0 0
  %1370 = vmatpush2.bf16.msra.mxu0 0
  %1371 = vmatprep.subr.bf16.mxu0 0
  %1372 = vmatpush2.bf16.msra.mxu0 0
  %1373 = vmatprep.subr.bf16.mxu0 0
  %1374 = vmatpush2.bf16.msra.mxu0 0
  %1375 = vmatprep.mubr.bf16.mxu0 0
  %1376 = vmatmul.mubr.bf16.gmra.mxu0 %v1341
  %v1377 = vpop.f32.mrf.mxu0
  %v1378 = vadd.f32 %v1332, %v1377
  %v1379 = vpop.f32.mrf.mxu0
  %v1380 = vpop.f32.mrf.mxu0
  %v1381 = vpop.f32.mrf.mxu0
  %1382 = vdwg.mxu0
  %v1383 = vadd.f32 %v1378, %v408
  %v1384 = vmul.f32 %v1383, 0.5
  %v1385 = vtanh.pop %v1384
  %v1386 = vmul.f32 %v1385, 0.5
  %v1387 = vadd.f32 %v1386, 0.5
  %v1388 = vtanh.pop %v1383
  %v1389 = vmul.f32 %v1387, %v1205
  %1391 = vrot.lane.b32.xlu0 %v1388, 64
  %v1392 = vpop.permute.xlu0 %1391
  %v1394 = vmul.f32 %v1387, %v1392
  %1396 = vrot.lane.b32.xlu0 %v1394, 32
  %v1397 = vpop.permute.xlu0 %1396
  %v1399 = vadd.f32 %v1389, %v1397
  %v1400 = vtanh.pop %v1399
  %1402 = vrot.lane.b32.xlu0 %v1400, 64
  %v1403 = vpop.permute.xlu0 %1402
  %v1405 = vmul.f32 %v1387, %v1403
  %vm1406 = vcmp.gt.s32.totalorder %v55, 5
  %v1407 = vsel %vm1406, 1, 0
  %v1408 = vcvt.s32.f32 %v1407
  %1410 = vset.pattern.permute.xlu0 0
  %1411 = vperm.xlu0 %1410, %v1408
  %v1412 = vpop.permute.xlu0 %1411
  %v1414 = vmul.f32 %v1405, %v1412
  %1416 = vrot.lane.b32.xlu0 %v1414, 64
  %v1417 = vpop.permute.xlu0 %1416
  %1419 = vst.msk [vmem:[%s9 + $0x8] sm:$0xff] %vm644, %v1417
  %1420 = vmatprep.subr.bf16.mxu0 0
  %1421 = vmatpush1.bf16.msra.mxu0 0
  %1422 = vmatprep.subr.bf16.mxu0 0
  %1423 = vmatpush1.bf16.msra.mxu0 0
  %1424 = vmatprep.subr.bf16.mxu0 0
  %1425 = vmatpush1.bf16.msra.mxu0 0
  %1426 = vmatprep.subr.bf16.mxu0 0
  %1427 = vmatpush1.bf16.msra.mxu0 0
  %1428 = vmatprep.subr.bf16.mxu0 0
  %1429 = vmatpush1.bf16.msra.mxu0 0
  %1430 = vmatprep.subr.bf16.mxu0 0
  %1431 = vmatpush1.bf16.msra.mxu0 0
  %1432 = vmatprep.subr.bf16.mxu0 0
  %1433 = vmatpush1.bf16.msra.mxu0 %v215
  %1434 = vmatprep.subr.bf16.mxu0 0
  %1435 = vmatpush1.bf16.msra.mxu0 %v214
  %1436 = vmatprep.subr.bf16.mxu0 0
  %1437 = vmatpush2.bf16.msra.mxu0 0
  %1438 = vmatprep.subr.bf16.mxu0 0
  %1439 = vmatpush2.bf16.msra.mxu0 0
  %1440 = vmatprep.subr.bf16.mxu0 0
  %1441 = vmatpush2.bf16.msra.mxu0 0
  %1442 = vmatprep.subr.bf16.mxu0 0
  %1443 = vmatpush2.bf16.msra.mxu0 0
  %1444 = vmatprep.subr.bf16.mxu0 0
  %1445 = vmatpush2.bf16.msra.mxu0 0
  %1446 = vmatprep.subr.bf16.mxu0 0
  %1447 = vmatpush2.bf16.msra.mxu0 0
  %1448 = vmatprep.subr.bf16.mxu0 0
  %1449 = vmatpush2.bf16.msra.mxu0 0
  %1450 = vmatprep.subr.bf16.mxu0 0
  %1451 = vmatpush2.bf16.msra.mxu0 0
  %1452 = vmatprep.mubr.bf16.mxu0 0
  %1453 = vmatmul.mubr.bf16.gmra.mxu0 %v1341
  %v1454 = vpop.f32.mrf.mxu0
  %v1455 = vadd.f32 0.0, %v1454
  %v1456 = vpop.f32.mrf.mxu0
  %v1457 = vpop.f32.mrf.mxu0
  %v1458 = vpop.f32.mrf.mxu0
  %1459 = vdwg.mxu0
  %v1460 = vadd.f32 %v196, %v1455
  %v1461 = vmul.f32 %v1460, 0.5
  %v1462 = vtanh.pop %v1461
  %v1463 = vmul.f32 %v1462, 0.5
  %v1464 = vadd.f32 %v1463, 0.5
  %v1465 = vtanh.pop %v1460
  %v1466 = vmul.f32 %v1464, %v1282
  %1468 = vrot.lane.b32.xlu0 %v1465, 64
  %v1469 = vpop.permute.xlu0 %1468
  %v1471 = vmul.f32 %v1464, %v1469
  %1473 = vrot.lane.b32.xlu0 %v1471, 32
  %v1474 = vpop.permute.xlu0 %1473
  %v1476 = vadd.f32 %v1466, %v1474
  %v1477 = vtanh.pop %v1476
  %1479 = vrot.lane.b32.xlu0 %v1477, 64
  %v1480 = vpop.permute.xlu0 %1479
  %v1482 = vmul.f32 %v1464, %v1480
  %v1483 = vpack.c.bf16 %v1482, %v1482
  %v1484 = vpack.c.bf16 %v1405, %v1405
  %1486 = vrot.lane.b32.xlu0 %v1484, 32
  %v1487 = vpop.permute.xlu0 %1486
  %v1489 = vsel %vm218, %v1487, 0
  %1491 = vmatprep.subr.bf16.mxu0 0
  %1492 = vmatpush1.bf16.msra.mxu0 0
  %1493 = vmatprep.subr.bf16.mxu0 0
  %1494 = vmatpush1.bf16.msra.mxu0 0
  %1495 = vmatprep.subr.bf16.mxu0 0
  %1496 = vmatpush1.bf16.msra.mxu0 0
  %1497 = vmatprep.subr.bf16.mxu0 0
  %1498 = vmatpush1.bf16.msra.mxu0 0
  %1499 = vmatprep.subr.bf16.mxu0 0
  %1500 = vmatpush1.bf16.msra.mxu0 0
  %1501 = vmatprep.subr.bf16.mxu0 0
  %1502 = vmatpush1.bf16.msra.mxu0 0
  %1503 = vmatprep.subr.bf16.mxu0 0
  %1504 = vmatpush1.bf16.msra.mxu0 %v300
  %1505 = vmatprep.subr.bf16.mxu0 0
  %1506 = vmatpush1.bf16.msra.mxu0 %v299
  %1507 = vmatprep.subr.bf16.mxu0 0
  %1508 = vmatpush2.bf16.msra.mxu0 0
  %1509 = vmatprep.subr.bf16.mxu0 0
  %1510 = vmatpush2.bf16.msra.mxu0 0
  %1511 = vmatprep.subr.bf16.mxu0 0
  %1512 = vmatpush2.bf16.msra.mxu0 0
  %1513 = vmatprep.subr.bf16.mxu0 0
  %1514 = vmatpush2.bf16.msra.mxu0 0
  %1515 = vmatprep.subr.bf16.mxu0 0
  %1516 = vmatpush2.bf16.msra.mxu0 0
  %1517 = vmatprep.subr.bf16.mxu0 0
  %1518 = vmatpush2.bf16.msra.mxu0 0
  %1519 = vmatprep.subr.bf16.mxu0 0
  %1520 = vmatpush2.bf16.msra.mxu0 0
  %1521 = vmatprep.subr.bf16.mxu0 0
  %1522 = vmatpush2.bf16.msra.mxu0 0
  %1523 = vmatprep.mubr.bf16.mxu0 0
  %1524 = vmatmul.mubr.bf16.gmra.mxu0 %v1489
  %v1525 = vpop.f32.mrf.mxu0
  %v1526 = vadd.f32 0.0, %v1525
  %v1527 = vpop.f32.mrf.mxu0
  %v1528 = vpop.f32.mrf.mxu0
  %v1529 = vpop.f32.mrf.mxu0
  %1530 = vdwg.mxu0
  %1532 = vrot.lane.b32.xlu0 %v1483, 32
  %v1533 = vpop.permute.xlu0 %1532
  %v1535 = vsel %vm218, %v1533, 0
  %1537 = vmatprep.subr.bf16.mxu0 0
  %1538 = vmatpush1.bf16.msra.mxu0 0
  %1539 = vmatprep.subr.bf16.mxu0 0
  %1540 = vmatpush1.bf16.msra.mxu0 0
  %1541 = vmatprep.subr.bf16.mxu0 0
  %1542 = vmatpush1.bf16.msra.mxu0 0
  %1543 = vmatprep.subr.bf16.mxu0 0
  %1544 = vmatpush1.bf16.msra.mxu0 0
  %1545 = vmatprep.subr.bf16.mxu0 0
  %1546 = vmatpush1.bf16.msra.mxu0 0
  %1547 = vmatprep.subr.bf16.mxu0 0
  %1548 = vmatpush1.bf16.msra.mxu0 0
  %1549 = vmatprep.subr.bf16.mxu0 0
  %1550 = vmatpush1.bf16.msra.mxu0 %v358
  %1551 = vmatprep.subr.bf16.mxu0 0
  %1552 = vmatpush1.bf16.msra.mxu0 %v357
  %1553 = vmatprep.subr.bf16.mxu0 0
  %1554 = vmatpush2.bf16.msra.mxu0 0
  %1555 = vmatprep.subr.bf16.mxu0 0
  %1556 = vmatpush2.bf16.msra.mxu0 0
  %1557 = vmatprep.subr.bf16.mxu0 0
  %1558 = vmatpush2.bf16.msra.mxu0 0
  %1559 = vmatprep.subr.bf16.mxu0 0
  %1560 = vmatpush2.bf16.msra.mxu0 0
  %1561 = vmatprep.subr.bf16.mxu0 0
  %1562 = vmatpush2.bf16.msra.mxu0 0
  %1563 = vmatprep.subr.bf16.mxu0 0
  %1564 = vmatpush2.bf16.msra.mxu0 0
  %1565 = vmatprep.subr.bf16.mxu0 0
  %1566 = vmatpush2.bf16.msra.mxu0 0
  %1567 = vmatprep.subr.bf16.mxu0 0
  %1568 = vmatpush2.bf16.msra.mxu0 0
  %1569 = vmatprep.mubr.bf16.mxu0 0
  %1570 = vmatmul.mubr.bf16.gmra.mxu0 %v1535
  %v1571 = vpop.f32.mrf.mxu0
  %v1572 = vadd.f32 %v1526, %v1571
  %v1573 = vpop.f32.mrf.mxu0
  %v1574 = vpop.f32.mrf.mxu0
  %v1575 = vpop.f32.mrf.mxu0
  %1576 = vdwg.mxu0
  %v1577 = vadd.f32 %v1572, %v408
  %v1578 = vmul.f32 %v1577, 0.5
  %v1579 = vtanh.pop %v1578
  %v1580 = vmul.f32 %v1579, 0.5
  %v1581 = vadd.f32 %v1580, 0.5
  %v1582 = vtanh.pop %v1577
  %v1583 = vmul.f32 %v1581, %v1399
  %1585 = vrot.lane.b32.xlu0 %v1582, 64
  %v1586 = vpop.permute.xlu0 %1585
  %v1588 = vmul.f32 %v1581, %v1586
  %1590 = vrot.lane.b32.xlu0 %v1588, 32
  %v1591 = vpop.permute.xlu0 %1590
  %v1593 = vadd.f32 %v1583, %v1591
  %v1594 = vtanh.pop %v1593
  %1596 = vrot.lane.b32.xlu0 %v1594, 64
  %v1597 = vpop.permute.xlu0 %1596
  %v1599 = vmul.f32 %v1581, %v1597
  %vm1600 = vcmp.gt.s32.totalorder %v55, 6
  %v1601 = vsel %vm1600, 1, 0
  %v1602 = vcvt.s32.f32 %v1601
  %1604 = vset.pattern.permute.xlu0 0
  %1605 = vperm.xlu0 %1604, %v1602
  %v1606 = vpop.permute.xlu0 %1605
  %v1608 = vmul.f32 %v1599, %v1606
  %1610 = vrot.lane.b32.xlu0 %v1608, 96
  %v1611 = vpop.permute.xlu0 %1610
  %1613 = vst.msk [vmem:[%s9 + $0x8] sm:$0xff] %vm839, %v1611
  %1614 = vmatprep.subr.bf16.mxu0 0
  %1615 = vmatpush1.bf16.msra.mxu0 0
  %1616 = vmatprep.subr.bf16.mxu0 0
  %1617 = vmatpush1.bf16.msra.mxu0 0
  %1618 = vmatprep.subr.bf16.mxu0 0
  %1619 = vmatpush1.bf16.msra.mxu0 0
  %1620 = vmatprep.subr.bf16.mxu0 0
  %1621 = vmatpush1.bf16.msra.mxu0 0
  %1622 = vmatprep.subr.bf16.mxu0 0
  %1623 = vmatpush1.bf16.msra.mxu0 0
  %1624 = vmatprep.subr.bf16.mxu0 0
  %1625 = vmatpush1.bf16.msra.mxu0 0
  %1626 = vmatprep.subr.bf16.mxu0 0
  %1627 = vmatpush1.bf16.msra.mxu0 %v215
  %1628 = vmatprep.subr.bf16.mxu0 0
  %1629 = vmatpush1.bf16.msra.mxu0 %v214
  %1630 = vmatprep.subr.bf16.mxu0 0
  %1631 = vmatpush2.bf16.msra.mxu0 0
  %1632 = vmatprep.subr.bf16.mxu0 0
  %1633 = vmatpush2.bf16.msra.mxu0 0
  %1634 = vmatprep.subr.bf16.mxu0 0
  %1635 = vmatpush2.bf16.msra.mxu0 0
  %1636 = vmatprep.subr.bf16.mxu0 0
  %1637 = vmatpush2.bf16.msra.mxu0 0
  %1638 = vmatprep.subr.bf16.mxu0 0
  %1639 = vmatpush2.bf16.msra.mxu0 0
  %1640 = vmatprep.subr.bf16.mxu0 0
  %1641 = vmatpush2.bf16.msra.mxu0 0
  %1642 = vmatprep.subr.bf16.mxu0 0
  %1643 = vmatpush2.bf16.msra.mxu0 0
  %1644 = vmatprep.subr.bf16.mxu0 0
  %1645 = vmatpush2.bf16.msra.mxu0 0
  %1646 = vmatprep.mubr.bf16.mxu0 0
  %1647 = vmatmul.mubr.bf16.gmra.mxu0 %v1535
  %v1648 = vpop.f32.mrf.mxu0
  %v1649 = vadd.f32 0.0, %v1648
  %v1650 = vpop.f32.mrf.mxu0
  %v1651 = vpop.f32.mrf.mxu0
  %v1652 = vpop.f32.mrf.mxu0
  %1653 = vdwg.mxu0
  %v1654 = vadd.f32 %v199, %v1649
  %v1655 = vmul.f32 %v1654, 0.5
  %v1656 = vtanh.pop %v1655
  %v1657 = vmul.f32 %v1656, 0.5
  %v1658 = vadd.f32 %v1657, 0.5
  %v1659 = vtanh.pop %v1654
  %v1660 = vmul.f32 %v1658, %v1476
  %1662 = vrot.lane.b32.xlu0 %v1659, 64
  %v1663 = vpop.permute.xlu0 %1662
  %v1665 = vmul.f32 %v1658, %v1663
  %1667 = vrot.lane.b32.xlu0 %v1665, 32
  %v1668 = vpop.permute.xlu0 %1667
  %v1670 = vadd.f32 %v1660, %v1668
  %v1671 = vtanh.pop %v1670
  %1673 = vrot.lane.b32.xlu0 %v1671, 64
  %v1674 = vpop.permute.xlu0 %1673
  %v1676 = vmul.f32 %v1658, %v1674
  %v1677 = vpack.c.bf16 %v1676, %v1676
  %v1678 = vpack.c.bf16 %v1599, %v1599
  %1680 = vrot.lane.b32.xlu0 %v1678, 32
  %v1681 = vpop.permute.xlu0 %1680
  %v1683 = vsel %vm218, %v1681, 0
  %1685 = vmatprep.subr.bf16.mxu0 0
  %1686 = vmatpush1.bf16.msra.mxu0 0
  %1687 = vmatprep.subr.bf16.mxu0 0
  %1688 = vmatpush1.bf16.msra.mxu0 0
  %1689 = vmatprep.subr.bf16.mxu0 0
  %1690 = vmatpush1.bf16.msra.mxu0 0
  %1691 = vmatprep.subr.bf16.mxu0 0
  %1692 = vmatpush1.bf16.msra.mxu0 0
  %1693 = vmatprep.subr.bf16.mxu0 0
  %1694 = vmatpush1.bf16.msra.mxu0 0
  %1695 = vmatprep.subr.bf16.mxu0 0
  %1696 = vmatpush1.bf16.msra.mxu0 0
  %1697 = vmatprep.subr.bf16.mxu0 0
  %1698 = vmatpush1.bf16.msra.mxu0 %v300
  %1699 = vmatprep.subr.bf16.mxu0 0
  %1700 = vmatpush1.bf16.msra.mxu0 %v299
  %1701 = vmatprep.subr.bf16.mxu0 0
  %1702 = vmatpush2.bf16.msra.mxu0 0
  %1703 = vmatprep.subr.bf16.mxu0 0
  %1704 = vmatpush2.bf16.msra.mxu0 0
  %1705 = vmatprep.subr.bf16.mxu0 0
  %1706 = vmatpush2.bf16.msra.mxu0 0
  %1707 = vmatprep.subr.bf16.mxu0 0
  %1708 = vmatpush2.bf16.msra.mxu0 0
  %1709 = vmatprep.subr.bf16.mxu0 0
  %1710 = vmatpush2.bf16.msra.mxu0 0
  %1711 = vmatprep.subr.bf16.mxu0 0
  %1712 = vmatpush2.bf16.msra.mxu0 0
  %1713 = vmatprep.subr.bf16.mxu0 0
  %1714 = vmatpush2.bf16.msra.mxu0 0
  %1715 = vmatprep.subr.bf16.mxu0 0
  %1716 = vmatpush2.bf16.msra.mxu0 0
  %1717 = vmatprep.mubr.bf16.mxu0 0
  %1718 = vmatmul.mubr.bf16.gmra.mxu0 %v1683
  %v1719 = vpop.f32.mrf.mxu0
  %v1720 = vadd.f32 0.0, %v1719
  %v1721 = vpop.f32.mrf.mxu0
  %v1722 = vpop.f32.mrf.mxu0
  %v1723 = vpop.f32.mrf.mxu0
  %1724 = vdwg.mxu0
  %1726 = vrot.lane.b32.xlu0 %v1677, 32
  %v1727 = vpop.permute.xlu0 %1726
  %v1729 = vsel %vm218, %v1727, 0
  %1731 = vmatprep.subr.bf16.mxu0 0
  %1732 = vmatpush1.bf16.msra.mxu0 0
  %1733 = vmatprep.subr.bf16.mxu0 0
  %1734 = vmatpush1.bf16.msra.mxu0 0
  %1735 = vmatprep.subr.bf16.mxu0 0
  %1736 = vmatpush1.bf16.msra.mxu0 0
  %1737 = vmatprep.subr.bf16.mxu0 0
  %1738 = vmatpush1.bf16.msra.mxu0 0
  %1739 = vmatprep.subr.bf16.mxu0 0
  %1740 = vmatpush1.bf16.msra.mxu0 0
  %1741 = vmatprep.subr.bf16.mxu0 0
  %1742 = vmatpush1.bf16.msra.mxu0 0
  %1743 = vmatprep.subr.bf16.mxu0 0
  %1744 = vmatpush1.bf16.msra.mxu0 %v358
  %1745 = vmatprep.subr.bf16.mxu0 0
  %1746 = vmatpush1.bf16.msra.mxu0 %v357
  %1747 = vmatprep.subr.bf16.mxu0 0
  %1748 = vmatpush2.bf16.msra.mxu0 0
  %1749 = vmatprep.subr.bf16.mxu0 0
  %1750 = vmatpush2.bf16.msra.mxu0 0
  %1751 = vmatprep.subr.bf16.mxu0 0
  %1752 = vmatpush2.bf16.msra.mxu0 0
  %1753 = vmatprep.subr.bf16.mxu0 0
  %1754 = vmatpush2.bf16.msra.mxu0 0
  %1755 = vmatprep.subr.bf16.mxu0 0
  %1756 = vmatpush2.bf16.msra.mxu0 0
  %1757 = vmatprep.subr.bf16.mxu0 0
  %1758 = vmatpush2.bf16.msra.mxu0 0
  %1759 = vmatprep.subr.bf16.mxu0 0
  %1760 = vmatpush2.bf16.msra.mxu0 0
  %1761 = vmatprep.subr.bf16.mxu0 0
  %1762 = vmatpush2.bf16.msra.mxu0 0
  %1763 = vmatprep.mubr.bf16.mxu0 0
  %1764 = vmatmul.mubr.bf16.gmra.mxu0 %v1729
  %v1765 = vpop.f32.mrf.mxu0
  %v1766 = vadd.f32 %v1720, %v1765
  %v1767 = vpop.f32.mrf.mxu0
  %v1768 = vpop.f32.mrf.mxu0
  %v1769 = vpop.f32.mrf.mxu0
  %1770 = vdwg.mxu0
  %v1771 = vadd.f32 %v1766, %v408
  %v1772 = vmul.f32 %v1771, 0.5
  %v1773 = vtanh.pop %v1772
  %v1774 = vmul.f32 %v1773, 0.5
  %v1775 = vadd.f32 %v1774, 0.5
  %v1776 = vtanh.pop %v1771
  %v1777 = vmul.f32 %v1775, %v1593
  %1779 = vrot.lane.b32.xlu0 %v1776, 64
  %v1780 = vpop.permute.xlu0 %1779
  %v1782 = vmul.f32 %v1775, %v1780
  %1784 = vrot.lane.b32.xlu0 %v1782, 32
  %v1785 = vpop.permute.xlu0 %1784
  %v1787 = vadd.f32 %v1777, %v1785
  %v1788 = vtanh.pop %v1787
  %1790 = vrot.lane.b32.xlu0 %v1788, 64
  %v1791 = vpop.permute.xlu0 %1790
  %v1793 = vmul.f32 %v1775, %v1791
  %vm1794 = vcmp.gt.s32.totalorder %v55, 7
  %v1795 = vsel %vm1794, 1, 0
  %v1796 = vcvt.s32.f32 %v1795
  %1798 = vset.pattern.permute.xlu0 0
  %1799 = vperm.xlu0 %1798, %v1796
  %v1800 = vpop.permute.xlu0 %1799
  %v1802 = vmul.f32 %v1793, %v1800
  %1803 = vst.msk [vmem:[%s9 + $0x8] sm:$0xff] %vm1030, %v1802
  // Predicated region
  $region38: #{sequence_embedding_forward.1} parent=0 // pred_check
    _
  $region39: #{sequence_embedding_forward.1} parent=0 // pred_check_branch
    %1805 = sbr.rel (0) target = $region41
  $region40: #{sequence_embedding_forward.1} parent=0 // pred_region
    _
  $region41: #{sequence_embedding_forward.1} parent=0 // pred_fallthru
    _
  // Predicated region
  $region42: #{sequence_embedding_forward.1} parent=0 // pred_check
    _
  $region43: #{sequence_embedding_forward.1} parent=0 // pred_check_branch
    %1807 = sbr.rel (0) target = $region45
  $region44: #{sequence_embedding_forward.1} parent=0 // pred_region
    _
  $region45: #{sequence_embedding_forward.1} parent=0 // pred_fallthru
    _

</llo_original>
